<compile_context>
chip_gen: v7x
topology: tpu7x:2x2x1
jax: 0.10.0
libtpu: 0.0.40
codegen_flags: <defaults>
</compile_context>

<pallas_src>
import jax
import jax.numpy as jnp
from jax import lax
from jax.experimental import pallas as pl
from jax.experimental.pallas import tpu as pltpu

BN_EPS = 1e-5

_VMEM_SPEC = pl.BlockSpec(memory_space=pltpu.MemorySpace.VMEM)


# ----------------------------------------------------------------------------
# Fused forward: backbone "net.features(x)" + projector MLP
# TODO(synk): NetWrapper wraps an arbitrary user backbone; here a deterministic
# synthetic feature extractor (flatten -> Linear -> ReLU) stands in for
# net.features so the projector hot path is exercised end-to-end.
# ----------------------------------------------------------------------------
def _fused_forward_kernel(x_ref, wf_ref, bf_ref, w1_ref, gb_ref, w2_ref,
                          b2_ref, proj_ref, rep_ref):
    # ---- backbone: Linear + ReLU (single full-K matmul, no grid/accumulator)
    wf = wf_ref[...].astype(jnp.float32)          # bf16 -> f32 (in-VMEM, cheap)
    rep = jnp.maximum(
        jnp.dot(x_ref[...], wf, preferred_element_type=jnp.float32)
        + bf_ref[...],
        0.0,
    )
    rep_ref[...] = rep.astype(rep_ref.dtype)

    # ---- projector Linear 1 (bias b1 omitted: it is batch-constant and
    #      cancels exactly in the training-mode BatchNorm below)
    w1 = w1_ref[...].astype(jnp.float32)
    h = jnp.dot(rep, w1, preferred_element_type=jnp.float32)

    # ---- BatchNorm1d (training-mode batch statistics, biased variance)
    mean = jnp.mean(h, axis=0, keepdims=True)
    var = jnp.mean((h - mean) ** 2, axis=0, keepdims=True)
    scale = gb_ref[0:1, :] * lax.rsqrt(var + BN_EPS)   # gamma folded into scale
    hn = (h - mean) * scale + gb_ref[1:2, :]           # + beta

    # ---- ReLU
    hn = jnp.maximum(hn, 0.0)

    # ---- projector Linear 2
    w2 = w2_ref[...].astype(jnp.float32)
    proj_ref[...] = (
        jnp.dot(hn, w2, preferred_element_type=jnp.float32) + b2_ref[...]
    ).astype(proj_ref.dtype)


def _features_only_kernel(x_ref, wf_ref, bf_ref, rep_ref):
    wf = wf_ref[...].astype(jnp.float32)
    rep_ref[...] = jnp.maximum(
        jnp.dot(x_ref[...], wf, preferred_element_type=jnp.float32)
        + bf_ref[...],
        0.0,
    ).astype(rep_ref.dtype)


def net_wrapper_forward(params, x, feat_only=False):
    B = x.shape[0]
    x_flat = x.reshape(B, -1)
    in_dim = x_flat.shape[1]
    feat_dim = params["wf"].shape[1]
    hidden = params["w1"].shape[1]
    proj_size = params["w2"].shape[1]

    if feat_only:
        cost = pl.CostEstimate(
            flops=2 * B * in_dim * feat_dim,
            transcendentals=0,
            bytes_accessed=(in_dim * feat_dim) * 2          # bf16 wf
            + (B * in_dim + feat_dim + B * feat_dim) * 4,   # x, bf, rep (f32)
        )
        return pl.pallas_call(
            _features_only_kernel,
            out_shape=jax.ShapeDtypeStruct((B, feat_dim), x_flat.dtype),
            in_specs=[_VMEM_SPEC] * 3,
            out_specs=_VMEM_SPEC,
            cost_estimate=cost,
        )(x_flat, params["wf"], params["bf"])

    cost = pl.CostEstimate(
        flops=2 * B * (in_dim * feat_dim + feat_dim * hidden + hidden * proj_size),
        transcendentals=0,
        bytes_accessed=(in_dim * feat_dim + feat_dim * hidden + hidden * proj_size) * 2
        + (B * in_dim + feat_dim + 2 * hidden + proj_size
           + B * feat_dim + B * proj_size) * 4,
    )

    projection, representation = pl.pallas_call(
        _fused_forward_kernel,
        out_shape=(
            jax.ShapeDtypeStruct((B, proj_size), x_flat.dtype),   # projection
            jax.ShapeDtypeStruct((B, feat_dim), x_flat.dtype),    # representation
        ),
        in_specs=[_VMEM_SPEC] * 7,
        out_specs=(_VMEM_SPEC, _VMEM_SPEC),
        cost_estimate=cost,
    )(
        x_flat,
        params["wf"], params["bf"],
        params["w1"], params["bn_gb"],
        params["w2"], params["b2"],
    )
    return projection, representation


# ----------------------------------------------------------------------------
# Parameter construction + pure-JAX reference
# ----------------------------------------------------------------------------
def _linear_init(key, fan_in, fan_out):
    kw, kb = jax.random.split(key)
    bound = 1.0 / jnp.sqrt(jnp.float32(fan_in))
    w = jax.random.uniform(kw, (fan_in, fan_out), jnp.float32, -bound, bound)
    b = jax.random.uniform(kb, (fan_out,), jnp.float32, -bound, bound)
    return w, b


def make_params(key, in_dim, feat_dim, hidden, proj_size):
    k0, k1, k2 = jax.random.split(key, 3)
    wf, bf = _linear_init(k0, in_dim, feat_dim)
    w1, b1 = _linear_init(k1, feat_dim, hidden)
    w2, b2 = _linear_init(k2, hidden, proj_size)
    # Weights stored in bf16 once (halves the dominant per-call HBM weight DMA);
    # the kernel upcasts to f32 in VMEM and accumulates in f32.
    # Biases / BN affine are pre-shaped & pre-packed here so the forward wrapper
    # issues no extra XLA ops per call.
    return {
        "wf": wf.astype(jnp.bfloat16), "bf": bf.reshape(1, -1),
        "w1": w1.astype(jnp.bfloat16), "b1": b1.reshape(1, -1),
        "bn_gb": jnp.concatenate(
            [jnp.ones((1, hidden), jnp.float32),     # gamma
             jnp.zeros((1, hidden), jnp.float32)],   # beta
            axis=0),
        "w2": w2.astype(jnp.bfloat16), "b2": b2.reshape(1, -1),
    }


def _reference_forward(params, x):
    # Faithful to the PyTorch module: Linear(+bias) -> BatchNorm1d -> ReLU ->
    # Linear.  b1 is included here; it cancels mathematically in the BN, which
    # is exactly the identity the kernel exploits by omitting it.
    B = x.shape[0]
    xf = x.reshape(B, -1)
    rep = jnp.maximum(xf @ params["wf"].astype(jnp.float32) + params["bf"], 0.0)
    h = rep @ params["w1"].astype(jnp.float32) + params["b1"]
    mean = jnp.mean(h, axis=0, keepdims=True)
    var = jnp.mean((h - mean) ** 2, axis=0, keepdims=True)
    hn = (h - mean) / jnp.sqrt(var + BN_EPS)
    hn = hn * params["bn_gb"][0:1, :] + params["bn_gb"][1:2, :]
    hn = jnp.maximum(hn, 0.0)
    proj = hn @ params["w2"].astype(jnp.float32) + params["b2"]
    return proj, rep


if __name__ == "__main__":
    B, C, H, W = 2, 4, 16, 16
    feat_dim = 256          # "dim" produced by net.features
    proj_hidden = 512       # projection_hidden_size
    proj_size = 128         # projection_size

    key = jax.random.PRNGKey(0)
    kx, kp = jax.random.split(key)
    x = jax.random.normal(kx, (B, C, H, W), jnp.float32)
    params = make_params(kp, C * H * W, feat_dim, proj_hidden, proj_size)

    projection, representation = net_wrapper_forward(params, x)
    jax.block_until_ready((projection, representation))

    # feat_only path
    rep_only = net_wrapper_forward(params, x, feat_only=True)
    jax.block_until_ready(rep_only)

    ref_proj, ref_rep = _reference_forward(params, x)
    assert projection.shape == (B, proj_size)
    assert representation.shape == (B, feat_dim)
    assert jnp.allclose(projection, ref_proj, atol=1e-4, rtol=1e-4)
    assert jnp.allclose(representation, ref_rep, atol=1e-4, rtol=1e-4)
    assert jnp.allclose(rep_only, ref_rep, atol=1e-4, rtol=1e-4)

    print("KERNEL_OK")
</pallas_src>

<mosaic_0001>
module attributes {stable_mosaic.version = 11 : i64} {
  func.func @_fused_forward_kernel(%arg0: memref<2x1024xf32, #tpu.memory_space<vmem>>, %arg1: memref<1024x256xbf16, #tpu.memory_space<vmem>>, %arg2: memref<1x256xf32, #tpu.memory_space<vmem>>, %arg3: memref<256x512xbf16, #tpu.memory_space<vmem>>, %arg4: memref<2x512xf32, #tpu.memory_space<vmem>>, %arg5: memref<512x128xbf16, #tpu.memory_space<vmem>>, %arg6: memref<1x128xf32, #tpu.memory_space<vmem>>, %arg7: memref<2x128xf32, #tpu.memory_space<vmem>>, %arg8: memref<2x256xf32, #tpu.memory_space<vmem>>) attributes {dimension_semantics = [], scalar_prefetch = 0 : i64, scratch_operands = 0 : i64, tpu.core_type = #tpu.core_type<tc>} {
    %c0 = arith.constant 0 : index
    %c0_0 = arith.constant 0 : index
    %0 = vector.load %arg1[%c0, %c0_0] : memref<1024x256xbf16, #tpu.memory_space<vmem>>, vector<1024x256xbf16>
    %1 = arith.extf %0 : vector<1024x256xbf16> to vector<1024x256xf32>
    %c0_1 = arith.constant 0 : index
    %c0_2 = arith.constant 0 : index
    %2 = vector.load %arg0[%c0_1, %c0_2] : memref<2x1024xf32, #tpu.memory_space<vmem>>, vector<2x1024xf32>
    %cst = arith.constant dense<0.000000e+00> : vector<2x256xf32>
    %3 = tpu.matmul %2, %1, %cst {dimension_numbers = #tpu.dot_dimension_numbers<[1], [0], [0], [1], [0, 0, 1, 1], [], []>} : vector<2x1024xf32>, vector<1024x256xf32>, vector<2x256xf32> -> vector<2x256xf32>
    %c0_3 = arith.constant 0 : index
    %c0_4 = arith.constant 0 : index
    %4 = vector.load %arg2[%c0_3, %c0_4] : memref<1x256xf32, #tpu.memory_space<vmem>>, vector<1x256xf32>
    %5 = vector.broadcast %4 : vector<1x256xf32> to vector<2x256xf32>
    %6 = arith.addf %3, %5 : vector<2x256xf32>
    %cst_5 = arith.constant 0.000000e+00 : f32
    %7 = vector.broadcast %cst_5 : f32 to vector<2x256xf32>
    %8 = arith.maximumf %6, %7 : vector<2x256xf32>
    %c0_6 = arith.constant 0 : index
    %c0_7 = arith.constant 0 : index
    %9 = vector.load %arg8[%c0_6, %c0_7] : memref<2x256xf32, #tpu.memory_space<vmem>>, vector<2x256xf32>
    tpu.vector_store %arg8[%c0_6, %c0_7], %8 {strides = array<i32>} : memref<2x256xf32, #tpu.memory_space<vmem>>, vector<2x256xf32>,
    %c0_8 = arith.constant 0 : index
    %c0_9 = arith.constant 0 : index
    %10 = vector.load %arg3[%c0_8, %c0_9] : memref<256x512xbf16, #tpu.memory_space<vmem>>, vector<256x512xbf16>
    %11 = arith.extf %10 : vector<256x512xbf16> to vector<256x512xf32>
    %cst_10 = arith.constant dense<0.000000e+00> : vector<2x512xf32>
    %12 = tpu.matmul %8, %11, %cst_10 {dimension_numbers = #tpu.dot_dimension_numbers<[1], [0], [0], [1], [0, 0, 1, 1], [], []>} : vector<2x256xf32>, vector<256x512xf32>, vector<2x512xf32> -> vector<2x512xf32>
    %cst_11 = arith.constant dense<0.000000e+00> : vector<512xf32>
    %13 = vector.multi_reduction <add>, %12, %cst_11 [0] : vector<2x512xf32> to vector<512xf32>
    %14 = vector.shape_cast %13 : vector<512xf32> to vector<1x512xf32>
    %cst_12 = arith.constant 2.000000e+00 : f32
    %15 = vector.broadcast %cst_12 : f32 to vector<1x512xf32>
    %16 = arith.divf %14, %15 : vector<1x512xf32>
    %17 = vector.broadcast %16 : vector<1x512xf32> to vector<2x512xf32>
    %18 = arith.subf %12, %17 : vector<2x512xf32>
    %19 = arith.mulf %18, %18 : vector<2x512xf32>
    %cst_13 = arith.constant dense<0.000000e+00> : vector<512xf32>
    %20 = vector.multi_reduction <add>, %19, %cst_13 [0] : vector<2x512xf32> to vector<512xf32>
    %21 = vector.shape_cast %20 : vector<512xf32> to vector<1x512xf32>
    %cst_14 = arith.constant 2.000000e+00 : f32
    %22 = vector.broadcast %cst_14 : f32 to vector<1x512xf32>
    %23 = arith.divf %21, %22 : vector<1x512xf32>
    %c0_15 = arith.constant 0 : index
    %c0_16 = arith.constant 0 : index
    %24 = vector.load %arg4[%c0_15, %c0_16] : memref<2x512xf32, #tpu.memory_space<vmem>>, vector<1x512xf32>
    %cst_17 = arith.constant 9.99999974E-6 : f32
    %25 = vector.broadcast %cst_17 : f32 to vector<1x512xf32>
    %26 = arith.addf %23, %25 : vector<1x512xf32>
    %27 = math.rsqrt %26 : vector<1x512xf32>
    %28 = arith.mulf %24, %27 : vector<1x512xf32>
    %29 = vector.broadcast %16 : vector<1x512xf32> to vector<2x512xf32>
    %30 = arith.subf %12, %29 : vector<2x512xf32>
    %31 = vector.broadcast %28 : vector<1x512xf32> to vector<2x512xf32>
    %32 = arith.mulf %30, %31 : vector<2x512xf32>
    %c1 = arith.constant 1 : index
    %c0_18 = arith.constant 0 : index
    %33 = vector.load %arg4[%c1, %c0_18] : memref<2x512xf32, #tpu.memory_space<vmem>>, vector<1x512xf32>
    %34 = vector.broadcast %33 : vector<1x512xf32> to vector<2x512xf32>
    %35 = arith.addf %32, %34 : vector<2x512xf32>
    %cst_19 = arith.constant 0.000000e+00 : f32
    %36 = vector.broadcast %cst_19 : f32 to vector<2x512xf32>
    %37 = arith.maximumf %35, %36 : vector<2x512xf32>
    %c0_20 = arith.constant 0 : index
    %c0_21 = arith.constant 0 : index
    %38 = vector.load %arg5[%c0_20, %c0_21] : memref<512x128xbf16, #tpu.memory_space<vmem>>, vector<512x128xbf16>
    %39 = arith.extf %38 : vector<512x128xbf16> to vector<512x128xf32>
    %cst_22 = arith.constant dense<0.000000e+00> : vector<2x128xf32>
    %40 = tpu.matmul %37, %39, %cst_22 {dimension_numbers = #tpu.dot_dimension_numbers<[1], [0], [0], [1], [0, 0, 1, 1], [], []>} : vector<2x512xf32>, vector<512x128xf32>, vector<2x128xf32> -> vector<2x128xf32>
    %c0_23 = arith.constant 0 : index
    %c0_24 = arith.constant 0 : index
    %41 = vector.load %arg6[%c0_23, %c0_24] : memref<1x128xf32, #tpu.memory_space<vmem>>, vector<1x128xf32>
    %42 = vector.broadcast %41 : vector<1x128xf32> to vector<2x128xf32>
    %43 = arith.addf %40, %42 : vector<2x128xf32>
    %c0_25 = arith.constant 0 : index
    %c0_26 = arith.constant 0 : index
    %44 = vector.load %arg7[%c0_25, %c0_26] : memref<2x128xf32, #tpu.memory_space<vmem>>, vector<2x128xf32>
    tpu.vector_store %arg7[%c0_25, %c0_26], %43 {strides = array<i32>} : memref<2x128xf32, #tpu.memory_space<vmem>>, vector<2x128xf32>,
    return
  }
}

</mosaic_0001>

<llo_original>
// kernel: tpu_custom_call.1
$region0: #{tpu_custom_call.1}
  #allocation0 [shape = 'u32[]', space=smem, size = 0x4, offset = 0x4, fixed_abs, tag = 'smem constant byte address 0x4 - core index']
  #allocation1 [shape = 'u32[144,128]{1,0:T(1,128)}', space=vmem, size = 0x12000, scoped, tag = 'internal scratch']
  %s0 = inlined_call_operand.hbm [shape: f32[2,1024], index: 0, kind: input, shape index: {}]
  %s1 = inlined_call_operand.hbm [shape: bf16[1024,256], index: 1, kind: input, shape index: {}]
  %s2 = inlined_call_operand.vmem [shape: f32[1,256], index: 2, kind: input, shape index: {}]
  %s3 = inlined_call_operand.hbm [shape: bf16[256,512], index: 3, kind: input, shape index: {}]
  %s4 = inlined_call_operand.vmem [shape: f32[2,512], index: 4, kind: input, shape index: {}]
  %s5 = inlined_call_operand.hbm [shape: bf16[512,128], index: 5, kind: input, shape index: {}]
  %s6 = inlined_call_operand.vmem [shape: f32[1,128], index: 6, kind: input, shape index: {}]
  %s7 = inlined_call_operand.hbm [shape: f32[2,128], index: 7, kind: output, shape index: {0}]
  %s8 = inlined_call_operand.hbm [shape: f32[2,256], index: 8, kind: output, shape index: {1}]
  %9 = xla_tuple %s7, %s8
  %s10 = sld [smem:[#allocation0]]
  $region62: #{tpu_custom_call.1} parent=0
    _
  %s12 = ssub.s32 1, %s10
  %s13 = scalar_select 0, %s12, %s10
  $region1: #{tpu_custom_call.1} parent=0
    #allocation2 [shape = 'u8[8192]{0}', space=vmem, size = 0x2000, scoped, tag = 'input window, operand 0, single buffered']
    #allocation3 [shape = 's32[1]{0}', space=sflag, size = 0x4, scoped, tag = 'scoped memory for tpu_custom_call.1']
    #allocation4 [shape = 's32[1]{0}', space=sflag, size = 0x4, scoped, tag = 'scoped memory for tpu_custom_call.1']
    #allocation5 [shape = 'u8[524288]{0}', space=vmem, size = 0x80000, scoped, tag = 'input window, operand 1, single buffered']
    #allocation6 [shape = 's32[1]{0}', space=sflag, size = 0x4, scoped, tag = 'scoped memory for tpu_custom_call.1']
    #allocation7 [shape = 'u8[262144]{0}', space=vmem, size = 0x40000, scoped, tag = 'input window, operand 3, single buffered']
    #allocation8 [shape = 'u8[131072]{0}', space=vmem, size = 0x20000, scoped, tag = 'input window, operand 5, single buffered']
    #allocation9 [shape = 's32[1]{0}', space=sflag, size = 0x4, scoped, tag = 'scoped memory for tpu_custom_call.1']
    #allocation10 [shape = 'u8[1024]{0}', space=vmem, size = 0x400, scoped, tag = 'output window, operand 0, single buffered']
    #allocation11 [shape = 'u8[2048]{0}', space=vmem, size = 0x800, scoped, tag = 'output window, operand 1, single buffered']
    #allocation12 [shape = 's32[1]{0}', space=sflag, size = 0x4, scoped, tag = 'scoped memory for tpu_custom_call.1']
    %14 = vsyncpa [#allocation3], 0
    %15 = vsyncpa [#allocation6], 0
    %16 = vsyncpa [#allocation9], 0
    %17 = vsyncpa [#allocation4], 0
    %18 = vsyncpa [#allocation12], 0
    // Predicated region
    $region2: #{tpu_custom_call.1} parent=1 // pred_check
      _
    $region3: #{tpu_custom_call.1} parent=1 // pred_check_branch
      %20 = sbr.rel (0) target = $region5
    $region4: #{tpu_custom_call.1} parent=1 // pred_region
      %s22 = ssub.s32 256, 256
      %23 = vsyncadd [#allocation3], %s22
      %s25 = sshll.u32 [#allocation2], 4
      %s26 = int_to_ptr.vmem [resolvable:$true] %s25
      %28 = dma.hbm_to_vmem [thread:$0]  %s0, 256, %s26, [#allocation3]
    $region5: #{tpu_custom_call.1} parent=1 // pred_fallthru
      _
    // Predicated region
    $region6: #{tpu_custom_call.1} parent=1 // pred_check
      _
    $region7: #{tpu_custom_call.1} parent=1 // pred_check_branch
      %30 = sbr.rel (0) target = $region9
    $region8: #{tpu_custom_call.1} parent=1 // pred_region
      %s32 = ssub.s32 16384, 16384
      %33 = vsyncadd [#allocation6], %s32
      %s34 = sshll.u32 [#allocation5], 4
      %s35 = int_to_ptr.vmem [resolvable:$true] %s34
      %40 = dma.hbm_to_vmem [thread:$0]  %s1, 16384, %s35, [#allocation6], 128, 128, 8
    $region9: #{tpu_custom_call.1} parent=1 // pred_fallthru
      _
    // Predicated region
    $region10: #{tpu_custom_call.1} parent=1 // pred_check
      _
    $region11: #{tpu_custom_call.1} parent=1 // pred_check_branch
      %42 = sbr.rel (0) target = $region13
    $region12: #{tpu_custom_call.1} parent=1 // pred_region
      _
    $region13: #{tpu_custom_call.1} parent=1 // pred_fallthru
      _
    // Predicated region
    $region14: #{tpu_custom_call.1} parent=1 // pred_check
      _
    $region15: #{tpu_custom_call.1} parent=1 // pred_check_branch
      %44 = sbr.rel (0) target = $region17
    $region16: #{tpu_custom_call.1} parent=1 // pred_region
      %s46 = ssub.s32 8192, 8192
      %47 = vsyncadd [#allocation6], %s46
      %s48 = sshll.u32 [#allocation7], 4
      %s49 = int_to_ptr.vmem [resolvable:$true] %s48
      %54 = dma.hbm_to_vmem [thread:$0]  %s3, 8192, %s49, [#allocation6], 256, 256, 16
    $region17: #{tpu_custom_call.1} parent=1 // pred_fallthru
      _
    // Predicated region
    $region18: #{tpu_custom_call.1} parent=1 // pred_check
      _
    $region19: #{tpu_custom_call.1} parent=1 // pred_check_branch
      %56 = sbr.rel (0) target = $region21
    $region20: #{tpu_custom_call.1} parent=1 // pred_region
      _
    $region21: #{tpu_custom_call.1} parent=1 // pred_fallthru
      _
    // Predicated region
    $region22: #{tpu_custom_call.1} parent=1 // pred_check
      _
    $region23: #{tpu_custom_call.1} parent=1 // pred_check_branch
      %58 = sbr.rel (0) target = $region25
    $region24: #{tpu_custom_call.1} parent=1 // pred_region
      %s60 = ssub.s32 4096, 4096
      %61 = vsyncadd [#allocation9], %s60
      %s62 = sshll.u32 [#allocation8], 4
      %s63 = int_to_ptr.vmem [resolvable:$true] %s62
      %68 = dma.hbm_to_vmem [thread:$0]  %s5, 4096, %s63, [#allocation9], 64, 64, 4
    $region25: #{tpu_custom_call.1} parent=1 // pred_fallthru
      _
    // Predicated region
    $region26: #{tpu_custom_call.1} parent=1 // pred_check
      _
    $region27: #{tpu_custom_call.1} parent=1 // pred_check_branch
      %70 = sbr.rel (0) target = $region29
    $region28: #{tpu_custom_call.1} parent=1 // pred_region
      _
    $region29: #{tpu_custom_call.1} parent=1 // pred_fallthru
      _
    // Predicated region
    $region30: #{tpu_custom_call.1} parent=1 // pred_check
      _
    $region31: #{tpu_custom_call.1} parent=1 // pred_check_branch
      %72 = sbr.rel (0) target = $region33
    $region32: #{tpu_custom_call.1} parent=1 // pred_region
      %73 = dma.done [#allocation3], 256
    $region33: #{tpu_custom_call.1} parent=1 // pred_fallthru
      _
    // Predicated region
    $region34: #{tpu_custom_call.1} parent=1 // pred_check
      _
    $region35: #{tpu_custom_call.1} parent=1 // pred_check_branch
      %75 = sbr.rel (0) target = $region37
    $region36: #{tpu_custom_call.1} parent=1 // pred_region
      %76 = dma.done [#allocation6], 16384
    $region37: #{tpu_custom_call.1} parent=1 // pred_fallthru
      _
    // Predicated region
    $region38: #{tpu_custom_call.1} parent=1 // pred_check
      _
    $region39: #{tpu_custom_call.1} parent=1 // pred_check_branch
      %78 = sbr.rel (0) target = $region41
    $region40: #{tpu_custom_call.1} parent=1 // pred_region
      %79 = dma.done [#allocation6], 8192
    $region41: #{tpu_custom_call.1} parent=1 // pred_fallthru
      _
    // Predicated region
    $region42: #{tpu_custom_call.1} parent=1 // pred_check
      _
    $region43: #{tpu_custom_call.1} parent=1 // pred_check_branch
      %81 = sbr.rel (0) target = $region45
    $region44: #{tpu_custom_call.1} parent=1 // pred_region
      %82 = dma.done [#allocation9], 4096
    $region45: #{tpu_custom_call.1} parent=1 // pred_fallthru
      _
    %v83 = vld [vmem:[#allocation5] sm:$0xff]
    %v84 = vld [vmem:[#allocation5 + $0x8] sm:$0xff]
    %v85 = vld [vmem:[#allocation5 + $0x10] sm:$0xff]
    %v86 = vld [vmem:[#allocation5 + $0x18] sm:$0xff]
    %v87 = vld [vmem:[#allocation5 + $0x20] sm:$0xff]
    %v88 = vld [vmem:[#allocation5 + $0x28] sm:$0xff]
    %v89 = vld [vmem:[#allocation5 + $0x30] sm:$0xff]
    %v90 = vld [vmem:[#allocation5 + $0x38] sm:$0xff]
    %v91 = vld [vmem:[#allocation5 + $0x40] sm:$0xff]
    %v92 = vld [vmem:[#allocation5 + $0x48] sm:$0xff]
    %v93 = vld [vmem:[#allocation5 + $0x50] sm:$0xff]
    %v94 = vld [vmem:[#allocation5 + $0x58] sm:$0xff]
    %v95 = vld [vmem:[#allocation5 + $0x60] sm:$0xff]
    %v96 = vld [vmem:[#allocation5 + $0x68] sm:$0xff]
    %v97 = vld [vmem:[#allocation5 + $0x70] sm:$0xff]
    %v98 = vld [vmem:[#allocation5 + $0x78] sm:$0xff]
    %v99 = vld [vmem:[#allocation5 + $0x80] sm:$0xff]
    %v100 = vld [vmem:[#allocation5 + $0x88] sm:$0xff]
    %v101 = vld [vmem:[#allocation5 + $0x90] sm:$0xff]
    %v102 = vld [vmem:[#allocation5 + $0x98] sm:$0xff]
    %v103 = vld [vmem:[#allocation5 + $0xa0] sm:$0xff]
    %v104 = vld [vmem:[#allocation5 + $0xa8] sm:$0xff]
    %v105 = vld [vmem:[#allocation5 + $0xb0] sm:$0xff]
    %v106 = vld [vmem:[#allocation5 + $0xb8] sm:$0xff]
    %v107 = vld [vmem:[#allocation5 + $0xc0] sm:$0xff]
    %v108 = vld [vmem:[#allocation5 + $0xc8] sm:$0xff]
    %v109 = vld [vmem:[#allocation5 + $0xd0] sm:$0xff]
    %v110 = vld [vmem:[#allocation5 + $0xd8] sm:$0xff]
    %v111 = vld [vmem:[#allocation5 + $0xe0] sm:$0xff]
    %v112 = vld [vmem:[#allocation5 + $0xe8] sm:$0xff]
    %v113 = vld [vmem:[#allocation5 + $0xf0] sm:$0xff]
    %v114 = vld [vmem:[#allocation5 + $0xf8] sm:$0xff]
    %v115 = vld [vmem:[#allocation5 + $0x100] sm:$0xff]
    %v116 = vld [vmem:[#allocation5 + $0x108] sm:$0xff]
    %v117 = vld [vmem:[#allocation5 + $0x110] sm:$0xff]
    %v118 = vld [vmem:[#allocation5 + $0x118] sm:$0xff]
    %v119 = vld [vmem:[#allocation5 + $0x120] sm:$0xff]
    %v120 = vld [vmem:[#allocation5 + $0x128] sm:$0xff]
    %v121 = vld [vmem:[#allocation5 + $0x130] sm:$0xff]
    %v122 = vld [vmem:[#allocation5 + $0x138] sm:$0xff]
    %v123 = vld [vmem:[#allocation5 + $0x140] sm:$0xff]
    %v124 = vld [vmem:[#allocation5 + $0x148] sm:$0xff]
    %v125 = vld [vmem:[#allocation5 + $0x150] sm:$0xff]
    %v126 = vld [vmem:[#allocation5 + $0x158] sm:$0xff]
    %v127 = vld [vmem:[#allocation5 + $0x160] sm:$0xff]
    %v128 = vld [vmem:[#allocation5 + $0x168] sm:$0xff]
    %v129 = vld [vmem:[#allocation5 + $0x170] sm:$0xff]
    %v130 = vld [vmem:[#allocation5 + $0x178] sm:$0xff]
    %v131 = vld [vmem:[#allocation5 + $0x180] sm:$0xff]
    %v132 = vld [vmem:[#allocation5 + $0x188] sm:$0xff]
    %v133 = vld [vmem:[#allocation5 + $0x190] sm:$0xff]
    %v134 = vld [vmem:[#allocation5 + $0x198] sm:$0xff]
    %v135 = vld [vmem:[#allocation5 + $0x1a0] sm:$0xff]
    %v136 = vld [vmem:[#allocation5 + $0x1a8] sm:$0xff]
    %v137 = vld [vmem:[#allocation5 + $0x1b0] sm:$0xff]
    %v138 = vld [vmem:[#allocation5 + $0x1b8] sm:$0xff]
    %v139 = vld [vmem:[#allocation5 + $0x1c0] sm:$0xff]
    %v140 = vld [vmem:[#allocation5 + $0x1c8] sm:$0xff]
    %v141 = vld [vmem:[#allocation5 + $0x1d0] sm:$0xff]
    %v142 = vld [vmem:[#allocation5 + $0x1d8] sm:$0xff]
    %v143 = vld [vmem:[#allocation5 + $0x1e0] sm:$0xff]
    %v144 = vld [vmem:[#allocation5 + $0x1e8] sm:$0xff]
    %v145 = vld [vmem:[#allocation5 + $0x1f0] sm:$0xff]
    %v146 = vld [vmem:[#allocation5 + $0x1f8] sm:$0xff]
    %v147 = vld [vmem:[#allocation5 + $0x200] sm:$0xff]
    %v148 = vld [vmem:[#allocation5 + $0x208] sm:$0xff]
    %v149 = vld [vmem:[#allocation5 + $0x210] sm:$0xff]
    %v150 = vld [vmem:[#allocation5 + $0x218] sm:$0xff]
    %v151 = vld [vmem:[#allocation5 + $0x220] sm:$0xff]
    %v152 = vld [vmem:[#allocation5 + $0x228] sm:$0xff]
    %v153 = vld [vmem:[#allocation5 + $0x230] sm:$0xff]
    %v154 = vld [vmem:[#allocation5 + $0x238] sm:$0xff]
    %v155 = vld [vmem:[#allocation5 + $0x240] sm:$0xff]
    %v156 = vld [vmem:[#allocation5 + $0x248] sm:$0xff]
    %v157 = vld [vmem:[#allocation5 + $0x250] sm:$0xff]
    %v158 = vld [vmem:[#allocation5 + $0x258] sm:$0xff]
    %v159 = vld [vmem:[#allocation5 + $0x260] sm:$0xff]
    %v160 = vld [vmem:[#allocation5 + $0x268] sm:$0xff]
    %v161 = vld [vmem:[#allocation5 + $0x270] sm:$0xff]
    %v162 = vld [vmem:[#allocation5 + $0x278] sm:$0xff]
    %v163 = vld [vmem:[#allocation5 + $0x280] sm:$0xff]
    %v164 = vld [vmem:[#allocation5 + $0x288] sm:$0xff]
    %v165 = vld [vmem:[#allocation5 + $0x290] sm:$0xff]
    %v166 = vld [vmem:[#allocation5 + $0x298] sm:$0xff]
    %v167 = vld [vmem:[#allocation5 + $0x2a0] sm:$0xff]
    %v168 = vld [vmem:[#allocation5 + $0x2a8] sm:$0xff]
    %v169 = vld [vmem:[#allocation5 + $0x2b0] sm:$0xff]
    %v170 = vld [vmem:[#allocation5 + $0x2b8] sm:$0xff]
    %v171 = vld [vmem:[#allocation5 + $0x2c0] sm:$0xff]
    %v172 = vld [vmem:[#allocation5 + $0x2c8] sm:$0xff]
    %v173 = vld [vmem:[#allocation5 + $0x2d0] sm:$0xff]
    %v174 = vld [vmem:[#allocation5 + $0x2d8] sm:$0xff]
    %v175 = vld [vmem:[#allocation5 + $0x2e0] sm:$0xff]
    %v176 = vld [vmem:[#allocation5 + $0x2e8] sm:$0xff]
    %v177 = vld [vmem:[#allocation5 + $0x2f0] sm:$0xff]
    %v178 = vld [vmem:[#allocation5 + $0x2f8] sm:$0xff]
    %v179 = vld [vmem:[#allocation5 + $0x300] sm:$0xff]
    %v180 = vld [vmem:[#allocation5 + $0x308] sm:$0xff]
    %v181 = vld [vmem:[#allocation5 + $0x310] sm:$0xff]
    %v182 = vld [vmem:[#allocation5 + $0x318] sm:$0xff]
    %v183 = vld [vmem:[#allocation5 + $0x320] sm:$0xff]
    %v184 = vld [vmem:[#allocation5 + $0x328] sm:$0xff]
    %v185 = vld [vmem:[#allocation5 + $0x330] sm:$0xff]
    %v186 = vld [vmem:[#allocation5 + $0x338] sm:$0xff]
    %v187 = vld [vmem:[#allocation5 + $0x340] sm:$0xff]
    %v188 = vld [vmem:[#allocation5 + $0x348] sm:$0xff]
    %v189 = vld [vmem:[#allocation5 + $0x350] sm:$0xff]
    %v190 = vld [vmem:[#allocation5 + $0x358] sm:$0xff]
    %v191 = vld [vmem:[#allocation5 + $0x360] sm:$0xff]
    %v192 = vld [vmem:[#allocation5 + $0x368] sm:$0xff]
    %v193 = vld [vmem:[#allocation5 + $0x370] sm:$0xff]
    %v194 = vld [vmem:[#allocation5 + $0x378] sm:$0xff]
    %v195 = vld [vmem:[#allocation5 + $0x380] sm:$0xff]
    %v196 = vld [vmem:[#allocation5 + $0x388] sm:$0xff]
    %v197 = vld [vmem:[#allocation5 + $0x390] sm:$0xff]
    %v198 = vld [vmem:[#allocation5 + $0x398] sm:$0xff]
    %v199 = vld [vmem:[#allocation5 + $0x3a0] sm:$0xff]
    %v200 = vld [vmem:[#allocation5 + $0x3a8] sm:$0xff]
    %v201 = vld [vmem:[#allocation5 + $0x3b0] sm:$0xff]
    %v202 = vld [vmem:[#allocation5 + $0x3b8] sm:$0xff]
    %v203 = vld [vmem:[#allocation5 + $0x3c0] sm:$0xff]
    %v204 = vld [vmem:[#allocation5 + $0x3c8] sm:$0xff]
    %v205 = vld [vmem:[#allocation5 + $0x3d0] sm:$0xff]
    %v206 = vld [vmem:[#allocation5 + $0x3d8] sm:$0xff]
    %v207 = vld [vmem:[#allocation5 + $0x3e0] sm:$0xff]
    %v208 = vld [vmem:[#allocation5 + $0x3e8] sm:$0xff]
    %v209 = vld [vmem:[#allocation5 + $0x3f0] sm:$0xff]
    %v210 = vld [vmem:[#allocation5 + $0x3f8] sm:$0xff]
    %v211 = vunpack.c.l.bf16 %v83
    %v212 = vunpack.c.h.bf16 %v83
    %v213 = vunpack.c.l.bf16 %v84
    %v214 = vunpack.c.h.bf16 %v84
    %v215 = vunpack.c.l.bf16 %v85
    %v216 = vunpack.c.h.bf16 %v85
    %v217 = vunpack.c.l.bf16 %v86
    %v218 = vunpack.c.h.bf16 %v86
    %v219 = vunpack.c.l.bf16 %v87
    %v220 = vunpack.c.h.bf16 %v87
    %v221 = vunpack.c.l.bf16 %v88
    %v222 = vunpack.c.h.bf16 %v88
    %v223 = vunpack.c.l.bf16 %v89
    %v224 = vunpack.c.h.bf16 %v89
    %v225 = vunpack.c.l.bf16 %v90
    %v226 = vunpack.c.h.bf16 %v90
    %v227 = vunpack.c.l.bf16 %v91
    %v228 = vunpack.c.h.bf16 %v91
    %v229 = vunpack.c.l.bf16 %v92
    %v230 = vunpack.c.h.bf16 %v92
    %v231 = vunpack.c.l.bf16 %v93
    %v232 = vunpack.c.h.bf16 %v93
    %v233 = vunpack.c.l.bf16 %v94
    %v234 = vunpack.c.h.bf16 %v94
    %v235 = vunpack.c.l.bf16 %v95
    %v236 = vunpack.c.h.bf16 %v95
    %v237 = vunpack.c.l.bf16 %v96
    %v238 = vunpack.c.h.bf16 %v96
    %v239 = vunpack.c.l.bf16 %v97
    %v240 = vunpack.c.h.bf16 %v97
    %v241 = vunpack.c.l.bf16 %v98
    %v242 = vunpack.c.h.bf16 %v98
    %v243 = vunpack.c.l.bf16 %v99
    %v244 = vunpack.c.h.bf16 %v99
    %v245 = vunpack.c.l.bf16 %v100
    %v246 = vunpack.c.h.bf16 %v100
    %v247 = vunpack.c.l.bf16 %v101
    %v248 = vunpack.c.h.bf16 %v101
    %v249 = vunpack.c.l.bf16 %v102
    %v250 = vunpack.c.h.bf16 %v102
    %v251 = vunpack.c.l.bf16 %v103
    %v252 = vunpack.c.h.bf16 %v103
    %v253 = vunpack.c.l.bf16 %v104
    %v254 = vunpack.c.h.bf16 %v104
    %v255 = vunpack.c.l.bf16 %v105
    %v256 = vunpack.c.h.bf16 %v105
    %v257 = vunpack.c.l.bf16 %v106
    %v258 = vunpack.c.h.bf16 %v106
    %v259 = vunpack.c.l.bf16 %v107
    %v260 = vunpack.c.h.bf16 %v107
    %v261 = vunpack.c.l.bf16 %v108
    %v262 = vunpack.c.h.bf16 %v108
    %v263 = vunpack.c.l.bf16 %v109
    %v264 = vunpack.c.h.bf16 %v109
    %v265 = vunpack.c.l.bf16 %v110
    %v266 = vunpack.c.h.bf16 %v110
    %v267 = vunpack.c.l.bf16 %v111
    %v268 = vunpack.c.h.bf16 %v111
    %v269 = vunpack.c.l.bf16 %v112
    %v270 = vunpack.c.h.bf16 %v112
    %v271 = vunpack.c.l.bf16 %v113
    %v272 = vunpack.c.h.bf16 %v113
    %v273 = vunpack.c.l.bf16 %v114
    %v274 = vunpack.c.h.bf16 %v114
    %v275 = vunpack.c.l.bf16 %v115
    %v276 = vunpack.c.h.bf16 %v115
    %v277 = vunpack.c.l.bf16 %v116
    %v278 = vunpack.c.h.bf16 %v116
    %v279 = vunpack.c.l.bf16 %v117
    %v280 = vunpack.c.h.bf16 %v117
    %v281 = vunpack.c.l.bf16 %v118
    %v282 = vunpack.c.h.bf16 %v118
    %v283 = vunpack.c.l.bf16 %v119
    %v284 = vunpack.c.h.bf16 %v119
    %v285 = vunpack.c.l.bf16 %v120
    %v286 = vunpack.c.h.bf16 %v120
    %v287 = vunpack.c.l.bf16 %v121
    %v288 = vunpack.c.h.bf16 %v121
    %v289 = vunpack.c.l.bf16 %v122
    %v290 = vunpack.c.h.bf16 %v122
    %v291 = vunpack.c.l.bf16 %v123
    %v292 = vunpack.c.h.bf16 %v123
    %v293 = vunpack.c.l.bf16 %v124
    %v294 = vunpack.c.h.bf16 %v124
    %v295 = vunpack.c.l.bf16 %v125
    %v296 = vunpack.c.h.bf16 %v125
    %v297 = vunpack.c.l.bf16 %v126
    %v298 = vunpack.c.h.bf16 %v126
    %v299 = vunpack.c.l.bf16 %v127
    %v300 = vunpack.c.h.bf16 %v127
    %v301 = vunpack.c.l.bf16 %v128
    %v302 = vunpack.c.h.bf16 %v128
    %v303 = vunpack.c.l.bf16 %v129
    %v304 = vunpack.c.h.bf16 %v129
    %v305 = vunpack.c.l.bf16 %v130
    %v306 = vunpack.c.h.bf16 %v130
    %v307 = vunpack.c.l.bf16 %v131
    %v308 = vunpack.c.h.bf16 %v131
    %v309 = vunpack.c.l.bf16 %v132
    %v310 = vunpack.c.h.bf16 %v132
    %v311 = vunpack.c.l.bf16 %v133
    %v312 = vunpack.c.h.bf16 %v133
    %v313 = vunpack.c.l.bf16 %v134
    %v314 = vunpack.c.h.bf16 %v134
    %v315 = vunpack.c.l.bf16 %v135
    %v316 = vunpack.c.h.bf16 %v135
    %v317 = vunpack.c.l.bf16 %v136
    %v318 = vunpack.c.h.bf16 %v136
    %v319 = vunpack.c.l.bf16 %v137
    %v320 = vunpack.c.h.bf16 %v137
    %v321 = vunpack.c.l.bf16 %v138
    %v322 = vunpack.c.h.bf16 %v138
    %v323 = vunpack.c.l.bf16 %v139
    %v324 = vunpack.c.h.bf16 %v139
    %v325 = vunpack.c.l.bf16 %v140
    %v326 = vunpack.c.h.bf16 %v140
    %v327 = vunpack.c.l.bf16 %v141
    %v328 = vunpack.c.h.bf16 %v141
    %v329 = vunpack.c.l.bf16 %v142
    %v330 = vunpack.c.h.bf16 %v142
    %v331 = vunpack.c.l.bf16 %v143
    %v332 = vunpack.c.h.bf16 %v143
    %v333 = vunpack.c.l.bf16 %v144
    %v334 = vunpack.c.h.bf16 %v144
    %v335 = vunpack.c.l.bf16 %v145
    %v336 = vunpack.c.h.bf16 %v145
    %v337 = vunpack.c.l.bf16 %v146
    %v338 = vunpack.c.h.bf16 %v146
    %v339 = vunpack.c.l.bf16 %v147
    %v340 = vunpack.c.h.bf16 %v147
    %v341 = vunpack.c.l.bf16 %v148
    %v342 = vunpack.c.h.bf16 %v148
    %v343 = vunpack.c.l.bf16 %v149
    %v344 = vunpack.c.h.bf16 %v149
    %v345 = vunpack.c.l.bf16 %v150
    %v346 = vunpack.c.h.bf16 %v150
    %v347 = vunpack.c.l.bf16 %v151
    %v348 = vunpack.c.h.bf16 %v151
    %v349 = vunpack.c.l.bf16 %v152
    %v350 = vunpack.c.h.bf16 %v152
    %v351 = vunpack.c.l.bf16 %v153
    %v352 = vunpack.c.h.bf16 %v153
    %v353 = vunpack.c.l.bf16 %v154
    %v354 = vunpack.c.h.bf16 %v154
    %v355 = vunpack.c.l.bf16 %v155
    %v356 = vunpack.c.h.bf16 %v155
    %v357 = vunpack.c.l.bf16 %v156
    %v358 = vunpack.c.h.bf16 %v156
    %v359 = vunpack.c.l.bf16 %v157
    %v360 = vunpack.c.h.bf16 %v157
    %v361 = vunpack.c.l.bf16 %v158
    %v362 = vunpack.c.h.bf16 %v158
    %v363 = vunpack.c.l.bf16 %v159
    %v364 = vunpack.c.h.bf16 %v159
    %v365 = vunpack.c.l.bf16 %v160
    %v366 = vunpack.c.h.bf16 %v160
    %v367 = vunpack.c.l.bf16 %v161
    %v368 = vunpack.c.h.bf16 %v161
    %v369 = vunpack.c.l.bf16 %v162
    %v370 = vunpack.c.h.bf16 %v162
    %v371 = vunpack.c.l.bf16 %v163
    %v372 = vunpack.c.h.bf16 %v163
    %v373 = vunpack.c.l.bf16 %v164
    %v374 = vunpack.c.h.bf16 %v164
    %v375 = vunpack.c.l.bf16 %v165
    %v376 = vunpack.c.h.bf16 %v165
    %v377 = vunpack.c.l.bf16 %v166
    %v378 = vunpack.c.h.bf16 %v166
    %v379 = vunpack.c.l.bf16 %v167
    %v380 = vunpack.c.h.bf16 %v167
    %v381 = vunpack.c.l.bf16 %v168
    %v382 = vunpack.c.h.bf16 %v168
    %v383 = vunpack.c.l.bf16 %v169
    %v384 = vunpack.c.h.bf16 %v169
    %v385 = vunpack.c.l.bf16 %v170
    %v386 = vunpack.c.h.bf16 %v170
    %v387 = vunpack.c.l.bf16 %v171
    %v388 = vunpack.c.h.bf16 %v171
    %v389 = vunpack.c.l.bf16 %v172
    %v390 = vunpack.c.h.bf16 %v172
    %v391 = vunpack.c.l.bf16 %v173
    %v392 = vunpack.c.h.bf16 %v173
    %v393 = vunpack.c.l.bf16 %v174
    %v394 = vunpack.c.h.bf16 %v174
    %v395 = vunpack.c.l.bf16 %v175
    %v396 = vunpack.c.h.bf16 %v175
    %v397 = vunpack.c.l.bf16 %v176
    %v398 = vunpack.c.h.bf16 %v176
    %v399 = vunpack.c.l.bf16 %v177
    %v400 = vunpack.c.h.bf16 %v177
    %v401 = vunpack.c.l.bf16 %v178
    %v402 = vunpack.c.h.bf16 %v178
    %v403 = vunpack.c.l.bf16 %v179
    %v404 = vunpack.c.h.bf16 %v179
    %v405 = vunpack.c.l.bf16 %v180
    %v406 = vunpack.c.h.bf16 %v180
    %v407 = vunpack.c.l.bf16 %v181
    %v408 = vunpack.c.h.bf16 %v181
    %v409 = vunpack.c.l.bf16 %v182
    %v410 = vunpack.c.h.bf16 %v182
    %v411 = vunpack.c.l.bf16 %v183
    %v412 = vunpack.c.h.bf16 %v183
    %v413 = vunpack.c.l.bf16 %v184
    %v414 = vunpack.c.h.bf16 %v184
    %v415 = vunpack.c.l.bf16 %v185
    %v416 = vunpack.c.h.bf16 %v185
    %v417 = vunpack.c.l.bf16 %v186
    %v418 = vunpack.c.h.bf16 %v186
    %v419 = vunpack.c.l.bf16 %v187
    %v420 = vunpack.c.h.bf16 %v187
    %v421 = vunpack.c.l.bf16 %v188
    %v422 = vunpack.c.h.bf16 %v188
    %v423 = vunpack.c.l.bf16 %v189
    %v424 = vunpack.c.h.bf16 %v189
    %v425 = vunpack.c.l.bf16 %v190
    %v426 = vunpack.c.h.bf16 %v190
    %v427 = vunpack.c.l.bf16 %v191
    %v428 = vunpack.c.h.bf16 %v191
    %v429 = vunpack.c.l.bf16 %v192
    %v430 = vunpack.c.h.bf16 %v192
    %v431 = vunpack.c.l.bf16 %v193
    %v432 = vunpack.c.h.bf16 %v193
    %v433 = vunpack.c.l.bf16 %v194
    %v434 = vunpack.c.h.bf16 %v194
    %v435 = vunpack.c.l.bf16 %v195
    %v436 = vunpack.c.h.bf16 %v195
    %v437 = vunpack.c.l.bf16 %v196
    %v438 = vunpack.c.h.bf16 %v196
    %v439 = vunpack.c.l.bf16 %v197
    %v440 = vunpack.c.h.bf16 %v197
    %v441 = vunpack.c.l.bf16 %v198
    %v442 = vunpack.c.h.bf16 %v198
    %v443 = vunpack.c.l.bf16 %v199
    %v444 = vunpack.c.h.bf16 %v199
    %v445 = vunpack.c.l.bf16 %v200
    %v446 = vunpack.c.h.bf16 %v200
    %v447 = vunpack.c.l.bf16 %v201
    %v448 = vunpack.c.h.bf16 %v201
    %v449 = vunpack.c.l.bf16 %v202
    %v450 = vunpack.c.h.bf16 %v202
    %v451 = vunpack.c.l.bf16 %v203
    %v452 = vunpack.c.h.bf16 %v203
    %v453 = vunpack.c.l.bf16 %v204
    %v454 = vunpack.c.h.bf16 %v204
    %v455 = vunpack.c.l.bf16 %v205
    %v456 = vunpack.c.h.bf16 %v205
    %v457 = vunpack.c.l.bf16 %v206
    %v458 = vunpack.c.h.bf16 %v206
    %v459 = vunpack.c.l.bf16 %v207
    %v460 = vunpack.c.h.bf16 %v207
    %v461 = vunpack.c.l.bf16 %v208
    %v462 = vunpack.c.h.bf16 %v208
    %v463 = vunpack.c.l.bf16 %v209
    %v464 = vunpack.c.h.bf16 %v209
    %v465 = vunpack.c.l.bf16 %v210
    %v466 = vunpack.c.h.bf16 %v210
    %v467 = vld [vmem:[#allocation2] sm:$0xff]
    %v468 = vld [vmem:[#allocation2 + $0x8] sm:$0xff]
    %v469 = vld [vmem:[%s2] sm:$0x3]
    %v471 = vlaneseq
    %v472 = vshrl.u32 %v471, 7
    %v473 = vsub.s32 0, %v472
    %v474 = vrot.slane %v469, %v473
    %v475 = vlaneseq
    %v476 = vshrl.u32 %v475, 7
    %v477 = vsub.s32 1, %v476
    %v478 = vrot.slane %v469, %v477
    %v483 = vcombine.high %v467, %v467
    %v485 = vunpack.c.l.s4 1983009808
    %v486 = vunpack.c.0.s8 %v485
    %v487 = vlaneseq
    %v488 = vshrl.u32 %v487, 7
    %v489 = vsub.s32 %v486, %v488
    %v490 = vrot.slane %v467, %v489
    %v492 = vunpack.c.l.s4 1983009808
    %v493 = vunpack.c.0.s8 %v492
    %v494 = vlaneseq
    %v495 = vshrl.u32 %v494, 7
    %v496 = vsub.s32 %v493, %v495
    %v497 = vrot.slane %v483, %v496
    %v498 = vcombine.high %v490, %v490
    %v499 = vcombine.high %v497, %v497
    %v500 = vcombine.high %v468, %v468
    %v502 = vunpack.c.l.s4 1983009808
    %v503 = vunpack.c.0.s8 %v502
    %v504 = vlaneseq
    %v505 = vshrl.u32 %v504, 7
    %v506 = vsub.s32 %v503, %v505
    %v507 = vrot.slane %v468, %v506
    %v509 = vunpack.c.l.s4 1983009808
    %v510 = vunpack.c.0.s8 %v509
    %v511 = vlaneseq
    %v512 = vshrl.u32 %v511, 7
    %v513 = vsub.s32 %v510, %v512
    %v514 = vrot.slane %v500, %v513
    %v515 = vcombine.high %v507, %v507
    %v516 = vcombine.high %v514, %v514
    %525 = vmatprep.subr.mxu0 %v212
    %526 = vmatpush1.msra.mxu0 %v211
    %527 = vmatprep.subr.mxu0 %v214
    %528 = vmatpush1.msra.mxu0 %v213
    %529 = vmatprep.subr.mxu0 %v216
    %530 = vmatpush1.msra.mxu0 %v215
    %531 = vmatprep.subr.mxu0 %v218
    %532 = vmatpush1.msra.mxu0 %v217
    %533 = vmatprep.subr.mxu0 %v220
    %534 = vmatpush1.msra.mxu0 %v219
    %535 = vmatprep.subr.mxu0 %v222
    %536 = vmatpush1.msra.mxu0 %v221
    %537 = vmatprep.subr.mxu0 %v224
    %538 = vmatpush1.msra.mxu0 %v223
    %539 = vmatprep.subr.mxu0 %v226
    %540 = vmatpush1.msra.mxu0 %v225
    %541 = vmatprep.subr.mxu0 %v228
    %542 = vmatpush1.msra.mxu0 %v227
    %543 = vmatprep.subr.mxu0 %v230
    %544 = vmatpush1.msra.mxu0 %v229
    %545 = vmatprep.subr.mxu0 %v232
    %546 = vmatpush1.msra.mxu0 %v231
    %547 = vmatprep.subr.mxu0 %v234
    %548 = vmatpush1.msra.mxu0 %v233
    %549 = vmatprep.subr.mxu0 %v236
    %550 = vmatpush1.msra.mxu0 %v235
    %551 = vmatprep.subr.mxu0 %v238
    %552 = vmatpush1.msra.mxu0 %v237
    %553 = vmatprep.subr.mxu0 %v240
    %554 = vmatpush1.msra.mxu0 %v239
    %555 = vmatprep.subr.mxu0 %v242
    %556 = vmatpush1.msra.mxu0 %v241
    %557 = vmatprep.subr.mxu0 %v244
    %558 = vmatpush1.msra.mxu0 %v243
    %559 = vmatprep.subr.mxu0 %v246
    %560 = vmatpush1.msra.mxu0 %v245
    %561 = vmatprep.subr.mxu0 %v248
    %562 = vmatpush1.msra.mxu0 %v247
    %563 = vmatprep.subr.mxu0 %v250
    %564 = vmatpush1.msra.mxu0 %v249
    %565 = vmatprep.subr.mxu0 %v252
    %566 = vmatpush1.msra.mxu0 %v251
    %567 = vmatprep.subr.mxu0 %v254
    %568 = vmatpush1.msra.mxu0 %v253
    %569 = vmatprep.subr.mxu0 %v256
    %570 = vmatpush1.msra.mxu0 %v255
    %571 = vmatprep.subr.mxu0 %v258
    %572 = vmatpush1.msra.mxu0 %v257
    %573 = vmatprep.subr.mxu0 %v260
    %574 = vmatpush1.msra.mxu0 %v259
    %575 = vmatprep.subr.mxu0 %v262
    %576 = vmatpush1.msra.mxu0 %v261
    %577 = vmatprep.subr.mxu0 %v264
    %578 = vmatpush1.msra.mxu0 %v263
    %579 = vmatprep.subr.mxu0 %v266
    %580 = vmatpush1.msra.mxu0 %v265
    %581 = vmatprep.subr.mxu0 %v268
    %582 = vmatpush1.msra.mxu0 %v267
    %583 = vmatprep.subr.mxu0 %v270
    %584 = vmatpush1.msra.mxu0 %v269
    %585 = vmatprep.subr.mxu0 %v272
    %586 = vmatpush1.msra.mxu0 %v271
    %587 = vmatprep.subr.mxu0 %v274
    %588 = vmatpush1.msra.mxu0 %v273
    %589 = vmatprep.mubr.f32.mxu0 %v498
    %590 = vmatmul.mubr.f32.gmra.mrb[0].mxu0 %v490
    %v591 = vpop.f32.mrb[0].mxu0
    %v592 = vadd.f32 %v474, %v591
    %v593 = vpop.f32.mrb[0].mxu0
    %v594 = vadd.f32 %v478, %v593
    %595 = vdwg.mxu0
    %596 = vmatprep.subr.mxu0 %v276
    %597 = vmatpush1.msra.mxu0 %v275
    %598 = vmatprep.subr.mxu0 %v278
    %599 = vmatpush1.msra.mxu0 %v277
    %600 = vmatprep.subr.mxu0 %v280
    %601 = vmatpush1.msra.mxu0 %v279
    %602 = vmatprep.subr.mxu0 %v282
    %603 = vmatpush1.msra.mxu0 %v281
    %604 = vmatprep.subr.mxu0 %v284
    %605 = vmatpush1.msra.mxu0 %v283
    %606 = vmatprep.subr.mxu0 %v286
    %607 = vmatpush1.msra.mxu0 %v285
    %608 = vmatprep.subr.mxu0 %v288
    %609 = vmatpush1.msra.mxu0 %v287
    %610 = vmatprep.subr.mxu0 %v290
    %611 = vmatpush1.msra.mxu0 %v289
    %612 = vmatprep.subr.mxu0 %v292
    %613 = vmatpush1.msra.mxu0 %v291
    %614 = vmatprep.subr.mxu0 %v294
    %615 = vmatpush1.msra.mxu0 %v293
    %616 = vmatprep.subr.mxu0 %v296
    %617 = vmatpush1.msra.mxu0 %v295
    %618 = vmatprep.subr.mxu0 %v298
    %619 = vmatpush1.msra.mxu0 %v297
    %620 = vmatprep.subr.mxu0 %v300
    %621 = vmatpush1.msra.mxu0 %v299
    %622 = vmatprep.subr.mxu0 %v302
    %623 = vmatpush1.msra.mxu0 %v301
    %624 = vmatprep.subr.mxu0 %v304
    %625 = vmatpush1.msra.mxu0 %v303
    %626 = vmatprep.subr.mxu0 %v306
    %627 = vmatpush1.msra.mxu0 %v305
    %628 = vmatprep.subr.mxu0 %v308
    %629 = vmatpush1.msra.mxu0 %v307
    %630 = vmatprep.subr.mxu0 %v310
    %631 = vmatpush1.msra.mxu0 %v309
    %632 = vmatprep.subr.mxu0 %v312
    %633 = vmatpush1.msra.mxu0 %v311
    %634 = vmatprep.subr.mxu0 %v314
    %635 = vmatpush1.msra.mxu0 %v313
    %636 = vmatprep.subr.mxu0 %v316
    %637 = vmatpush1.msra.mxu0 %v315
    %638 = vmatprep.subr.mxu0 %v318
    %639 = vmatpush1.msra.mxu0 %v317
    %640 = vmatprep.subr.mxu0 %v320
    %641 = vmatpush1.msra.mxu0 %v319
    %642 = vmatprep.subr.mxu0 %v322
    %643 = vmatpush1.msra.mxu0 %v321
    %644 = vmatprep.subr.mxu0 %v324
    %645 = vmatpush1.msra.mxu0 %v323
    %646 = vmatprep.subr.mxu0 %v326
    %647 = vmatpush1.msra.mxu0 %v325
    %648 = vmatprep.subr.mxu0 %v328
    %649 = vmatpush1.msra.mxu0 %v327
    %650 = vmatprep.subr.mxu0 %v330
    %651 = vmatpush1.msra.mxu0 %v329
    %652 = vmatprep.subr.mxu0 %v332
    %653 = vmatpush1.msra.mxu0 %v331
    %654 = vmatprep.subr.mxu0 %v334
    %655 = vmatpush1.msra.mxu0 %v333
    %656 = vmatprep.subr.mxu0 %v336
    %657 = vmatpush1.msra.mxu0 %v335
    %658 = vmatprep.subr.mxu0 %v338
    %659 = vmatpush1.msra.mxu0 %v337
    %660 = vmatprep.mubr.f32.mxu0 %v499
    %661 = vmatmul.mubr.f32.gmra.mrb[0].mxu0 %v497
    %v662 = vpop.f32.mrb[0].mxu0
    %v663 = vadd.f32 %v592, %v662
    %v664 = vpop.f32.mrb[0].mxu0
    %v665 = vadd.f32 %v594, %v664
    %666 = vdwg.mxu0
    %667 = vmatprep.subr.mxu0 %v340
    %668 = vmatpush1.msra.mxu0 %v339
    %669 = vmatprep.subr.mxu0 %v342
    %670 = vmatpush1.msra.mxu0 %v341
    %671 = vmatprep.subr.mxu0 %v344
    %672 = vmatpush1.msra.mxu0 %v343
    %673 = vmatprep.subr.mxu0 %v346
    %674 = vmatpush1.msra.mxu0 %v345
    %675 = vmatprep.subr.mxu0 %v348
    %676 = vmatpush1.msra.mxu0 %v347
    %677 = vmatprep.subr.mxu0 %v350
    %678 = vmatpush1.msra.mxu0 %v349
    %679 = vmatprep.subr.mxu0 %v352
    %680 = vmatpush1.msra.mxu0 %v351
    %681 = vmatprep.subr.mxu0 %v354
    %682 = vmatpush1.msra.mxu0 %v353
    %683 = vmatprep.subr.mxu0 %v356
    %684 = vmatpush1.msra.mxu0 %v355
    %685 = vmatprep.subr.mxu0 %v358
    %686 = vmatpush1.msra.mxu0 %v357
    %687 = vmatprep.subr.mxu0 %v360
    %688 = vmatpush1.msra.mxu0 %v359
    %689 = vmatprep.subr.mxu0 %v362
    %690 = vmatpush1.msra.mxu0 %v361
    %691 = vmatprep.subr.mxu0 %v364
    %692 = vmatpush1.msra.mxu0 %v363
    %693 = vmatprep.subr.mxu0 %v366
    %694 = vmatpush1.msra.mxu0 %v365
    %695 = vmatprep.subr.mxu0 %v368
    %696 = vmatpush1.msra.mxu0 %v367
    %697 = vmatprep.subr.mxu0 %v370
    %698 = vmatpush1.msra.mxu0 %v369
    %699 = vmatprep.subr.mxu0 %v372
    %700 = vmatpush1.msra.mxu0 %v371
    %701 = vmatprep.subr.mxu0 %v374
    %702 = vmatpush1.msra.mxu0 %v373
    %703 = vmatprep.subr.mxu0 %v376
    %704 = vmatpush1.msra.mxu0 %v375
    %705 = vmatprep.subr.mxu0 %v378
    %706 = vmatpush1.msra.mxu0 %v377
    %707 = vmatprep.subr.mxu0 %v380
    %708 = vmatpush1.msra.mxu0 %v379
    %709 = vmatprep.subr.mxu0 %v382
    %710 = vmatpush1.msra.mxu0 %v381
    %711 = vmatprep.subr.mxu0 %v384
    %712 = vmatpush1.msra.mxu0 %v383
    %713 = vmatprep.subr.mxu0 %v386
    %714 = vmatpush1.msra.mxu0 %v385
    %715 = vmatprep.subr.mxu0 %v388
    %716 = vmatpush1.msra.mxu0 %v387
    %717 = vmatprep.subr.mxu0 %v390
    %718 = vmatpush1.msra.mxu0 %v389
    %719 = vmatprep.subr.mxu0 %v392
    %720 = vmatpush1.msra.mxu0 %v391
    %721 = vmatprep.subr.mxu0 %v394
    %722 = vmatpush1.msra.mxu0 %v393
    %723 = vmatprep.subr.mxu0 %v396
    %724 = vmatpush1.msra.mxu0 %v395
    %725 = vmatprep.subr.mxu0 %v398
    %726 = vmatpush1.msra.mxu0 %v397
    %727 = vmatprep.subr.mxu0 %v400
    %728 = vmatpush1.msra.mxu0 %v399
    %729 = vmatprep.subr.mxu0 %v402
    %730 = vmatpush1.msra.mxu0 %v401
    %731 = vmatprep.mubr.f32.mxu0 %v515
    %732 = vmatmul.mubr.f32.gmra.mrb[0].mxu0 %v507
    %v733 = vpop.f32.mrb[0].mxu0
    %v734 = vadd.f32 %v663, %v733
    %v735 = vpop.f32.mrb[0].mxu0
    %v736 = vadd.f32 %v665, %v735
    %737 = vdwg.mxu0
    %738 = vmatprep.subr.mxu0 %v404
    %739 = vmatpush1.msra.mxu0 %v403
    %740 = vmatprep.subr.mxu0 %v406
    %741 = vmatpush1.msra.mxu0 %v405
    %742 = vmatprep.subr.mxu0 %v408
    %743 = vmatpush1.msra.mxu0 %v407
    %744 = vmatprep.subr.mxu0 %v410
    %745 = vmatpush1.msra.mxu0 %v409
    %746 = vmatprep.subr.mxu0 %v412
    %747 = vmatpush1.msra.mxu0 %v411
    %748 = vmatprep.subr.mxu0 %v414
    %749 = vmatpush1.msra.mxu0 %v413
    %750 = vmatprep.subr.mxu0 %v416
    %751 = vmatpush1.msra.mxu0 %v415
    %752 = vmatprep.subr.mxu0 %v418
    %753 = vmatpush1.msra.mxu0 %v417
    %754 = vmatprep.subr.mxu0 %v420
    %755 = vmatpush1.msra.mxu0 %v419
    %756 = vmatprep.subr.mxu0 %v422
    %757 = vmatpush1.msra.mxu0 %v421
    %758 = vmatprep.subr.mxu0 %v424
    %759 = vmatpush1.msra.mxu0 %v423
    %760 = vmatprep.subr.mxu0 %v426
    %761 = vmatpush1.msra.mxu0 %v425
    %762 = vmatprep.subr.mxu0 %v428
    %763 = vmatpush1.msra.mxu0 %v427
    %764 = vmatprep.subr.mxu0 %v430
    %765 = vmatpush1.msra.mxu0 %v429
    %766 = vmatprep.subr.mxu0 %v432
    %767 = vmatpush1.msra.mxu0 %v431
    %768 = vmatprep.subr.mxu0 %v434
    %769 = vmatpush1.msra.mxu0 %v433
    %770 = vmatprep.subr.mxu0 %v436
    %771 = vmatpush1.msra.mxu0 %v435
    %772 = vmatprep.subr.mxu0 %v438
    %773 = vmatpush1.msra.mxu0 %v437
    %774 = vmatprep.subr.mxu0 %v440
    %775 = vmatpush1.msra.mxu0 %v439
    %776 = vmatprep.subr.mxu0 %v442
    %777 = vmatpush1.msra.mxu0 %v441
    %778 = vmatprep.subr.mxu0 %v444
    %779 = vmatpush1.msra.mxu0 %v443
    %780 = vmatprep.subr.mxu0 %v446
    %781 = vmatpush1.msra.mxu0 %v445
    %782 = vmatprep.subr.mxu0 %v448
    %783 = vmatpush1.msra.mxu0 %v447
    %784 = vmatprep.subr.mxu0 %v450
    %785 = vmatpush1.msra.mxu0 %v449
    %786 = vmatprep.subr.mxu0 %v452
    %787 = vmatpush1.msra.mxu0 %v451
    %788 = vmatprep.subr.mxu0 %v454
    %789 = vmatpush1.msra.mxu0 %v453
    %790 = vmatprep.subr.mxu0 %v456
    %791 = vmatpush1.msra.mxu0 %v455
    %792 = vmatprep.subr.mxu0 %v458
    %793 = vmatpush1.msra.mxu0 %v457
    %794 = vmatprep.subr.mxu0 %v460
    %795 = vmatpush1.msra.mxu0 %v459
    %796 = vmatprep.subr.mxu0 %v462
    %797 = vmatpush1.msra.mxu0 %v461
    %798 = vmatprep.subr.mxu0 %v464
    %799 = vmatpush1.msra.mxu0 %v463
    %800 = vmatprep.subr.mxu0 %v466
    %801 = vmatpush1.msra.mxu0 %v465
    %802 = vmatprep.mubr.f32.mxu0 %v516
    %803 = vmatmul.mubr.f32.gmra.mrb[0].mxu0 %v514
    %v804 = vpop.f32.mrb[0].mxu0
    %v805 = vadd.f32 %v734, %v804
    %v806 = vpop.f32.mrb[0].mxu0
    %v807 = vadd.f32 %v736, %v806
    %808 = vdwg.mxu0
    %v809 = vmax.f32 %v805, 0.0
    %v810 = vmax.f32 %v807, 0.0
    %v813 = vcombine.low %v809, %v810
    %v815 = vunpack.c.l.s4 1983009808
    %v816 = vunpack.c.0.s8 %v815
    %v817 = vlaneseq
    %v818 = vshrl.u32 %v817, 7
    %v819 = vsub.s32 %v816, %v818
    %v820 = vrot.slane %v813, %v819
    %822 = vst [vmem:[#allocation11] sm:$0xf] %v820
    %v823 = vld [vmem:[#allocation7] sm:$0xff]
    %v824 = vld [vmem:[#allocation7 + $0x8] sm:$0xff]
    %v825 = vld [vmem:[#allocation7 + $0x10] sm:$0xff]
    %v826 = vld [vmem:[#allocation7 + $0x18] sm:$0xff]
    %v827 = vld [vmem:[#allocation7 + $0x20] sm:$0xff]
    %v828 = vld [vmem:[#allocation7 + $0x28] sm:$0xff]
    %v829 = vld [vmem:[#allocation7 + $0x30] sm:$0xff]
    %v830 = vld [vmem:[#allocation7 + $0x38] sm:$0xff]
    %v831 = vld [vmem:[#allocation7 + $0x40] sm:$0xff]
    %v832 = vld [vmem:[#allocation7 + $0x48] sm:$0xff]
    %v833 = vld [vmem:[#allocation7 + $0x50] sm:$0xff]
    %v834 = vld [vmem:[#allocation7 + $0x58] sm:$0xff]
    %v835 = vld [vmem:[#allocation7 + $0x60] sm:$0xff]
    %v836 = vld [vmem:[#allocation7 + $0x68] sm:$0xff]
    %v837 = vld [vmem:[#allocation7 + $0x70] sm:$0xff]
    %v838 = vld [vmem:[#allocation7 + $0x78] sm:$0xff]
    %v839 = vld [vmem:[#allocation7 + $0x80] sm:$0xff]
    %v840 = vld [vmem:[#allocation7 + $0x88] sm:$0xff]
    %v841 = vld [vmem:[#allocation7 + $0x90] sm:$0xff]
    %v842 = vld [vmem:[#allocation7 + $0x98] sm:$0xff]
    %v843 = vld [vmem:[#allocation7 + $0xa0] sm:$0xff]
    %v844 = vld [vmem:[#allocation7 + $0xa8] sm:$0xff]
    %v845 = vld [vmem:[#allocation7 + $0xb0] sm:$0xff]
    %v846 = vld [vmem:[#allocation7 + $0xb8] sm:$0xff]
    %v847 = vld [vmem:[#allocation7 + $0xc0] sm:$0xff]
    %v848 = vld [vmem:[#allocation7 + $0xc8] sm:$0xff]
    %v849 = vld [vmem:[#allocation7 + $0xd0] sm:$0xff]
    %v850 = vld [vmem:[#allocation7 + $0xd8] sm:$0xff]
    %v851 = vld [vmem:[#allocation7 + $0xe0] sm:$0xff]
    %v852 = vld [vmem:[#allocation7 + $0xe8] sm:$0xff]
    %v853 = vld [vmem:[#allocation7 + $0xf0] sm:$0xff]
    %v854 = vld [vmem:[#allocation7 + $0xf8] sm:$0xff]
    %v855 = vld [vmem:[#allocation7 + $0x100] sm:$0xff]
    %v856 = vld [vmem:[#allocation7 + $0x108] sm:$0xff]
    %v857 = vld [vmem:[#allocation7 + $0x110] sm:$0xff]
    %v858 = vld [vmem:[#allocation7 + $0x118] sm:$0xff]
    %v859 = vld [vmem:[#allocation7 + $0x120] sm:$0xff]
    %v860 = vld [vmem:[#allocation7 + $0x128] sm:$0xff]
    %v861 = vld [vmem:[#allocation7 + $0x130] sm:$0xff]
    %v862 = vld [vmem:[#allocation7 + $0x138] sm:$0xff]
    %v863 = vld [vmem:[#allocation7 + $0x140] sm:$0xff]
    %v864 = vld [vmem:[#allocation7 + $0x148] sm:$0xff]
    %v865 = vld [vmem:[#allocation7 + $0x150] sm:$0xff]
    %v866 = vld [vmem:[#allocation7 + $0x158] sm:$0xff]
    %v867 = vld [vmem:[#allocation7 + $0x160] sm:$0xff]
    %v868 = vld [vmem:[#allocation7 + $0x168] sm:$0xff]
    %v869 = vld [vmem:[#allocation7 + $0x170] sm:$0xff]
    %v870 = vld [vmem:[#allocation7 + $0x178] sm:$0xff]
    %v871 = vld [vmem:[#allocation7 + $0x180] sm:$0xff]
    %v872 = vld [vmem:[#allocation7 + $0x188] sm:$0xff]
    %v873 = vld [vmem:[#allocation7 + $0x190] sm:$0xff]
    %v874 = vld [vmem:[#allocation7 + $0x198] sm:$0xff]
    %v875 = vld [vmem:[#allocation7 + $0x1a0] sm:$0xff]
    %v876 = vld [vmem:[#allocation7 + $0x1a8] sm:$0xff]
    %v877 = vld [vmem:[#allocation7 + $0x1b0] sm:$0xff]
    %v878 = vld [vmem:[#allocation7 + $0x1b8] sm:$0xff]
    %v879 = vld [vmem:[#allocation7 + $0x1c0] sm:$0xff]
    %v880 = vld [vmem:[#allocation7 + $0x1c8] sm:$0xff]
    %v881 = vld [vmem:[#allocation7 + $0x1d0] sm:$0xff]
    %v882 = vld [vmem:[#allocation7 + $0x1d8] sm:$0xff]
    %v883 = vld [vmem:[#allocation7 + $0x1e0] sm:$0xff]
    %v884 = vld [vmem:[#allocation7 + $0x1e8] sm:$0xff]
    %v885 = vld [vmem:[#allocation7 + $0x1f0] sm:$0xff]
    %v886 = vld [vmem:[#allocation7 + $0x1f8] sm:$0xff]
    %v887 = vunpack.c.l.bf16 %v823
    %v888 = vunpack.c.h.bf16 %v823
    %v889 = vunpack.c.l.bf16 %v824
    %v890 = vunpack.c.h.bf16 %v824
    %v891 = vunpack.c.l.bf16 %v825
    %v892 = vunpack.c.h.bf16 %v825
    %v893 = vunpack.c.l.bf16 %v826
    %v894 = vunpack.c.h.bf16 %v826
    %v895 = vunpack.c.l.bf16 %v827
    %v896 = vunpack.c.h.bf16 %v827
    %v897 = vunpack.c.l.bf16 %v828
    %v898 = vunpack.c.h.bf16 %v828
    %v899 = vunpack.c.l.bf16 %v829
    %v900 = vunpack.c.h.bf16 %v829
    %v901 = vunpack.c.l.bf16 %v830
    %v902 = vunpack.c.h.bf16 %v830
    %v903 = vunpack.c.l.bf16 %v831
    %v904 = vunpack.c.h.bf16 %v831
    %v905 = vunpack.c.l.bf16 %v832
    %v906 = vunpack.c.h.bf16 %v832
    %v907 = vunpack.c.l.bf16 %v833
    %v908 = vunpack.c.h.bf16 %v833
    %v909 = vunpack.c.l.bf16 %v834
    %v910 = vunpack.c.h.bf16 %v834
    %v911 = vunpack.c.l.bf16 %v835
    %v912 = vunpack.c.h.bf16 %v835
    %v913 = vunpack.c.l.bf16 %v836
    %v914 = vunpack.c.h.bf16 %v836
    %v915 = vunpack.c.l.bf16 %v837
    %v916 = vunpack.c.h.bf16 %v837
    %v917 = vunpack.c.l.bf16 %v838
    %v918 = vunpack.c.h.bf16 %v838
    %v919 = vunpack.c.l.bf16 %v839
    %v920 = vunpack.c.h.bf16 %v839
    %v921 = vunpack.c.l.bf16 %v840
    %v922 = vunpack.c.h.bf16 %v840
    %v923 = vunpack.c.l.bf16 %v841
    %v924 = vunpack.c.h.bf16 %v841
    %v925 = vunpack.c.l.bf16 %v842
    %v926 = vunpack.c.h.bf16 %v842
    %v927 = vunpack.c.l.bf16 %v843
    %v928 = vunpack.c.h.bf16 %v843
    %v929 = vunpack.c.l.bf16 %v844
    %v930 = vunpack.c.h.bf16 %v844
    %v931 = vunpack.c.l.bf16 %v845
    %v932 = vunpack.c.h.bf16 %v845
    %v933 = vunpack.c.l.bf16 %v846
    %v934 = vunpack.c.h.bf16 %v846
    %v935 = vunpack.c.l.bf16 %v847
    %v936 = vunpack.c.h.bf16 %v847
    %v937 = vunpack.c.l.bf16 %v848
    %v938 = vunpack.c.h.bf16 %v848
    %v939 = vunpack.c.l.bf16 %v849
    %v940 = vunpack.c.h.bf16 %v849
    %v941 = vunpack.c.l.bf16 %v850
    %v942 = vunpack.c.h.bf16 %v850
    %v943 = vunpack.c.l.bf16 %v851
    %v944 = vunpack.c.h.bf16 %v851
    %v945 = vunpack.c.l.bf16 %v852
    %v946 = vunpack.c.h.bf16 %v852
    %v947 = vunpack.c.l.bf16 %v853
    %v948 = vunpack.c.h.bf16 %v853
    %v949 = vunpack.c.l.bf16 %v854
    %v950 = vunpack.c.h.bf16 %v854
    %v951 = vunpack.c.l.bf16 %v855
    %v952 = vunpack.c.h.bf16 %v855
    %v953 = vunpack.c.l.bf16 %v856
    %v954 = vunpack.c.h.bf16 %v856
    %v955 = vunpack.c.l.bf16 %v857
    %v956 = vunpack.c.h.bf16 %v857
    %v957 = vunpack.c.l.bf16 %v858
    %v958 = vunpack.c.h.bf16 %v858
    %v959 = vunpack.c.l.bf16 %v859
    %v960 = vunpack.c.h.bf16 %v859
    %v961 = vunpack.c.l.bf16 %v860
    %v962 = vunpack.c.h.bf16 %v860
    %v963 = vunpack.c.l.bf16 %v861
    %v964 = vunpack.c.h.bf16 %v861
    %v965 = vunpack.c.l.bf16 %v862
    %v966 = vunpack.c.h.bf16 %v862
    %v967 = vunpack.c.l.bf16 %v863
    %v968 = vunpack.c.h.bf16 %v863
    %v969 = vunpack.c.l.bf16 %v864
    %v970 = vunpack.c.h.bf16 %v864
    %v971 = vunpack.c.l.bf16 %v865
    %v972 = vunpack.c.h.bf16 %v865
    %v973 = vunpack.c.l.bf16 %v866
    %v974 = vunpack.c.h.bf16 %v866
    %v975 = vunpack.c.l.bf16 %v867
    %v976 = vunpack.c.h.bf16 %v867
    %v977 = vunpack.c.l.bf16 %v868
    %v978 = vunpack.c.h.bf16 %v868
    %v979 = vunpack.c.l.bf16 %v869
    %v980 = vunpack.c.h.bf16 %v869
    %v981 = vunpack.c.l.bf16 %v870
    %v982 = vunpack.c.h.bf16 %v870
    %v983 = vunpack.c.l.bf16 %v871
    %v984 = vunpack.c.h.bf16 %v871
    %v985 = vunpack.c.l.bf16 %v872
    %v986 = vunpack.c.h.bf16 %v872
    %v987 = vunpack.c.l.bf16 %v873
    %v988 = vunpack.c.h.bf16 %v873
    %v989 = vunpack.c.l.bf16 %v874
    %v990 = vunpack.c.h.bf16 %v874
    %v991 = vunpack.c.l.bf16 %v875
    %v992 = vunpack.c.h.bf16 %v875
    %v993 = vunpack.c.l.bf16 %v876
    %v994 = vunpack.c.h.bf16 %v876
    %v995 = vunpack.c.l.bf16 %v877
    %v996 = vunpack.c.h.bf16 %v877
    %v997 = vunpack.c.l.bf16 %v878
    %v998 = vunpack.c.h.bf16 %v878
    %v999 = vunpack.c.l.bf16 %v879
    %v1000 = vunpack.c.h.bf16 %v879
    %v1001 = vunpack.c.l.bf16 %v880
    %v1002 = vunpack.c.h.bf16 %v880
    %v1003 = vunpack.c.l.bf16 %v881
    %v1004 = vunpack.c.h.bf16 %v881
    %v1005 = vunpack.c.l.bf16 %v882
    %v1006 = vunpack.c.h.bf16 %v882
    %v1007 = vunpack.c.l.bf16 %v883
    %v1008 = vunpack.c.h.bf16 %v883
    %v1009 = vunpack.c.l.bf16 %v884
    %v1010 = vunpack.c.h.bf16 %v884
    %v1011 = vunpack.c.l.bf16 %v885
    %v1012 = vunpack.c.h.bf16 %v885
    %v1013 = vunpack.c.l.bf16 %v886
    %v1014 = vunpack.c.h.bf16 %v886
    %1015 = vmatprep.subr.mxu0 %v888
    %1016 = vmatpush1.msra.mxu0 %v887
    %1017 = vmatprep.subr.mxu0 %v892
    %1018 = vmatpush1.msra.mxu0 %v891
    %1019 = vmatprep.subr.mxu0 %v896
    %1020 = vmatpush1.msra.mxu0 %v895
    %1021 = vmatprep.subr.mxu0 %v900
    %1022 = vmatpush1.msra.mxu0 %v899
    %1023 = vmatprep.subr.mxu0 %v904
    %1024 = vmatpush1.msra.mxu0 %v903
    %1025 = vmatprep.subr.mxu0 %v908
    %1026 = vmatpush1.msra.mxu0 %v907
    %1027 = vmatprep.subr.mxu0 %v912
    %1028 = vmatpush1.msra.mxu0 %v911
    %1029 = vmatprep.subr.mxu0 %v916
    %1030 = vmatpush1.msra.mxu0 %v915
    %1031 = vmatprep.subr.mxu0 %v920
    %1032 = vmatpush1.msra.mxu0 %v919
    %1033 = vmatprep.subr.mxu0 %v924
    %1034 = vmatpush1.msra.mxu0 %v923
    %1035 = vmatprep.subr.mxu0 %v928
    %1036 = vmatpush1.msra.mxu0 %v927
    %1037 = vmatprep.subr.mxu0 %v932
    %1038 = vmatpush1.msra.mxu0 %v931
    %1039 = vmatprep.subr.mxu0 %v936
    %1040 = vmatpush1.msra.mxu0 %v935
    %1041 = vmatprep.subr.mxu0 %v940
    %1042 = vmatpush1.msra.mxu0 %v939
    %1043 = vmatprep.subr.mxu0 %v944
    %1044 = vmatpush1.msra.mxu0 %v943
    %1045 = vmatprep.subr.mxu0 %v948
    %1046 = vmatpush1.msra.mxu0 %v947
    %1047 = vmatprep.subr.mxu0 %v952
    %1048 = vmatpush1.msra.mxu0 %v951
    %1049 = vmatprep.subr.mxu0 %v956
    %1050 = vmatpush1.msra.mxu0 %v955
    %1051 = vmatprep.subr.mxu0 %v960
    %1052 = vmatpush1.msra.mxu0 %v959
    %1053 = vmatprep.subr.mxu0 %v964
    %1054 = vmatpush1.msra.mxu0 %v963
    %1055 = vmatprep.subr.mxu0 %v968
    %1056 = vmatpush1.msra.mxu0 %v967
    %1057 = vmatprep.subr.mxu0 %v972
    %1058 = vmatpush1.msra.mxu0 %v971
    %1059 = vmatprep.subr.mxu0 %v976
    %1060 = vmatpush1.msra.mxu0 %v975
    %1061 = vmatprep.subr.mxu0 %v980
    %1062 = vmatpush1.msra.mxu0 %v979
    %1063 = vmatprep.subr.mxu0 %v984
    %1064 = vmatpush1.msra.mxu0 %v983
    %1065 = vmatprep.subr.mxu0 %v988
    %1066 = vmatpush1.msra.mxu0 %v987
    %1067 = vmatprep.subr.mxu0 %v992
    %1068 = vmatpush1.msra.mxu0 %v991
    %1069 = vmatprep.subr.mxu0 %v996
    %1070 = vmatpush1.msra.mxu0 %v995
    %1071 = vmatprep.subr.mxu0 %v1000
    %1072 = vmatpush1.msra.mxu0 %v999
    %1073 = vmatprep.subr.mxu0 %v1004
    %1074 = vmatpush1.msra.mxu0 %v1003
    %1075 = vmatprep.subr.mxu0 %v1008
    %1076 = vmatpush1.msra.mxu0 %v1007
    %1077 = vmatprep.subr.mxu0 %v1012
    %1078 = vmatpush1.msra.mxu0 %v1011
    %1079 = vmatprep.mubr.f32.mxu0 %v810
    %1080 = vmatmul.mubr.f32.gmra.mrb[0].mxu0 %v809
    %v1081 = vpop.f32.mrb[0].mxu0
    %v1082 = vadd.f32 0.0, %v1081
    %v1083 = vpop.f32.mrb[0].mxu0
    %v1084 = vadd.f32 0.0, %v1083
    %1085 = vdwg.mxu0
    %1086 = vmatprep.subr.mxu0 %v890
    %1087 = vmatpush1.msra.mxu0 %v889
    %1088 = vmatprep.subr.mxu0 %v894
    %1089 = vmatpush1.msra.mxu0 %v893
    %1090 = vmatprep.subr.mxu0 %v898
    %1091 = vmatpush1.msra.mxu0 %v897
    %1092 = vmatprep.subr.mxu0 %v902
    %1093 = vmatpush1.msra.mxu0 %v901
    %1094 = vmatprep.subr.mxu0 %v906
    %1095 = vmatpush1.msra.mxu0 %v905
    %1096 = vmatprep.subr.mxu0 %v910
    %1097 = vmatpush1.msra.mxu0 %v909
    %1098 = vmatprep.subr.mxu0 %v914
    %1099 = vmatpush1.msra.mxu0 %v913
    %1100 = vmatprep.subr.mxu0 %v918
    %1101 = vmatpush1.msra.mxu0 %v917
    %1102 = vmatprep.subr.mxu0 %v922
    %1103 = vmatpush1.msra.mxu0 %v921
    %1104 = vmatprep.subr.mxu0 %v926
    %1105 = vmatpush1.msra.mxu0 %v925
    %1106 = vmatprep.subr.mxu0 %v930
    %1107 = vmatpush1.msra.mxu0 %v929
    %1108 = vmatprep.subr.mxu0 %v934
    %1109 = vmatpush1.msra.mxu0 %v933
    %1110 = vmatprep.subr.mxu0 %v938
    %1111 = vmatpush1.msra.mxu0 %v937
    %1112 = vmatprep.subr.mxu0 %v942
    %1113 = vmatpush1.msra.mxu0 %v941
    %1114 = vmatprep.subr.mxu0 %v946
    %1115 = vmatpush1.msra.mxu0 %v945
    %1116 = vmatprep.subr.mxu0 %v950
    %1117 = vmatpush1.msra.mxu0 %v949
    %1118 = vmatprep.subr.mxu0 %v954
    %1119 = vmatpush1.msra.mxu0 %v953
    %1120 = vmatprep.subr.mxu0 %v958
    %1121 = vmatpush1.msra.mxu0 %v957
    %1122 = vmatprep.subr.mxu0 %v962
    %1123 = vmatpush1.msra.mxu0 %v961
    %1124 = vmatprep.subr.mxu0 %v966
    %1125 = vmatpush1.msra.mxu0 %v965
    %1126 = vmatprep.subr.mxu0 %v970
    %1127 = vmatpush1.msra.mxu0 %v969
    %1128 = vmatprep.subr.mxu0 %v974
    %1129 = vmatpush1.msra.mxu0 %v973
    %1130 = vmatprep.subr.mxu0 %v978
    %1131 = vmatpush1.msra.mxu0 %v977
    %1132 = vmatprep.subr.mxu0 %v982
    %1133 = vmatpush1.msra.mxu0 %v981
    %1134 = vmatprep.subr.mxu0 %v986
    %1135 = vmatpush1.msra.mxu0 %v985
    %1136 = vmatprep.subr.mxu0 %v990
    %1137 = vmatpush1.msra.mxu0 %v989
    %1138 = vmatprep.subr.mxu0 %v994
    %1139 = vmatpush1.msra.mxu0 %v993
    %1140 = vmatprep.subr.mxu0 %v998
    %1141 = vmatpush1.msra.mxu0 %v997
    %1142 = vmatprep.subr.mxu0 %v1002
    %1143 = vmatpush1.msra.mxu0 %v1001
    %1144 = vmatprep.subr.mxu0 %v1006
    %1145 = vmatpush1.msra.mxu0 %v1005
    %1146 = vmatprep.subr.mxu0 %v1010
    %1147 = vmatpush1.msra.mxu0 %v1009
    %1148 = vmatprep.subr.mxu0 %v1014
    %1149 = vmatpush1.msra.mxu0 %v1013
    %1150 = vmatprep.mubr.f32.mxu0 %v810
    %1151 = vmatmul.mubr.f32.gmra.mrb[0].mxu0 %v809
    %v1152 = vpop.f32.mrb[0].mxu0
    %v1153 = vadd.f32 0.0, %v1152
    %v1154 = vpop.f32.mrb[0].mxu0
    %v1155 = vadd.f32 0.0, %v1154
    %1156 = vdwg.mxu0
    %vm1157 = vcmask 1041408
    %v1158 = vsel %vm1157, %v1082, 0.0
    %v1159 = vrot.slane %v1158, 4
    %v1160 = vadd.f32 %v1158, %v1159
    %v1161 = vrot.slane %v1160, 2
    %v1162 = vadd.f32 %v1160, %v1161
    %v1163 = vrot.slane %v1162, 1
    %v1164 = vadd.f32 %v1162, %v1163
    %v1165 = vsel %vm1157, %v1084, 0.0
    %v1166 = vrot.slane %v1165, 4
    %v1167 = vadd.f32 %v1165, %v1166
    %v1168 = vrot.slane %v1167, 2
    %v1169 = vadd.f32 %v1167, %v1168
    %v1170 = vrot.slane %v1169, 1
    %v1171 = vadd.f32 %v1169, %v1170
    %v1172 = vsel %vm1157, %v1153, 0.0
    %v1173 = vrot.slane %v1172, 4
    %v1174 = vadd.f32 %v1172, %v1173
    %v1175 = vrot.slane %v1174, 2
    %v1176 = vadd.f32 %v1174, %v1175
    %v1177 = vrot.slane %v1176, 1
    %v1178 = vadd.f32 %v1176, %v1177
    %v1179 = vsel %vm1157, %v1155, 0.0
    %v1180 = vrot.slane %v1179, 4
    %v1181 = vadd.f32 %v1179, %v1180
    %v1182 = vrot.slane %v1181, 2
    %v1183 = vadd.f32 %v1181, %v1182
    %v1184 = vrot.slane %v1183, 1
    %v1185 = vadd.f32 %v1183, %v1184
    %v1186 = vrcp.pop 2.0
    %v1187 = vmul.f32 %v1164, %v1186
    %v1188 = vmul.f32 %v1171, %v1186
    %v1189 = vmul.f32 %v1178, %v1186
    %v1190 = vmul.f32 %v1185, %v1186
    %v1191 = vsub.f32 %v1082, %v1187
    %v1192 = vsub.f32 %v1084, %v1188
    %v1193 = vsub.f32 %v1153, %v1189
    %v1194 = vsub.f32 %v1155, %v1190
    %v1195 = vmul.f32 %v1191, %v1191
    %v1196 = vmul.f32 %v1192, %v1192
    %v1197 = vmul.f32 %v1193, %v1193
    %v1198 = vmul.f32 %v1194, %v1194
    %v1199 = vsel %vm1157, %v1195, 0.0
    %v1200 = vrot.slane %v1199, 4
    %v1201 = vadd.f32 %v1199, %v1200
    %v1202 = vrot.slane %v1201, 2
    %v1203 = vadd.f32 %v1201, %v1202
    %v1204 = vrot.slane %v1203, 1
    %v1205 = vadd.f32 %v1203, %v1204
    %v1206 = vsel %vm1157, %v1196, 0.0
    %v1207 = vrot.slane %v1206, 4
    %v1208 = vadd.f32 %v1206, %v1207
    %v1209 = vrot.slane %v1208, 2
    %v1210 = vadd.f32 %v1208, %v1209
    %v1211 = vrot.slane %v1210, 1
    %v1212 = vadd.f32 %v1210, %v1211
    %v1213 = vsel %vm1157, %v1197, 0.0
    %v1214 = vrot.slane %v1213, 4
    %v1215 = vadd.f32 %v1213, %v1214
    %v1216 = vrot.slane %v1215, 2
    %v1217 = vadd.f32 %v1215, %v1216
    %v1218 = vrot.slane %v1217, 1
    %v1219 = vadd.f32 %v1217, %v1218
    %v1220 = vsel %vm1157, %v1198, 0.0
    %v1221 = vrot.slane %v1220, 4
    %v1222 = vadd.f32 %v1220, %v1221
    %v1223 = vrot.slane %v1222, 2
    %v1224 = vadd.f32 %v1222, %v1223
    %v1225 = vrot.slane %v1224, 1
    %v1226 = vadd.f32 %v1224, %v1225
    %v1227 = vmul.f32 %v1205, %v1186
    %v1228 = vmul.f32 %v1212, %v1186
    %v1229 = vmul.f32 %v1219, %v1186
    %v1230 = vmul.f32 %v1226, %v1186
    %v1231 = vld [vmem:[%s4] ss:$2 sm:$0xf]
    %v1232 = vadd.f32 %v1227, 1e-05
    %v1233 = vadd.f32 %v1228, 1e-05
    %v1234 = vadd.f32 %v1229, 1e-05
    %v1235 = vadd.f32 %v1230, 1e-05
    %v1236 = vrsqrt.pop %v1232
    %v1237 = vrsqrt.pop %v1233
    %v1238 = vrsqrt.pop %v1234
    %v1239 = vrsqrt.pop %v1235
    %v1244 = vcombine.low %v1236, %v1237
    %v1245 = vcombine.low %v1238, %v1239
    %v1247 = vunpack.c.l.s4 1966171168
    %v1248 = vunpack.c.0.s8 %v1247
    %v1249 = vlaneseq
    %v1250 = vshrl.u32 %v1249, 7
    %v1251 = vsub.s32 %v1248, %v1250
    %v1252 = vrot.slane %v1244, %v1251
    %v1254 = vunpack.c.l.s4 1966171168
    %v1255 = vunpack.c.0.s8 %v1254
    %v1256 = vlaneseq
    %v1257 = vshrl.u32 %v1256, 7
    %v1258 = vsub.s32 %v1255, %v1257
    %v1259 = vrot.slane %v1245, %v1258
    %v1260 = vcombine.low %v1252, %v1259
    %v1262 = vunpack.c.l.s4 1966171168
    %v1263 = vunpack.c.0.s8 %v1262
    %v1264 = vlaneseq
    %v1265 = vshrl.u32 %v1264, 7
    %v1266 = vsub.s32 %v1263, %v1265
    %v1267 = vrot.slane %v1260, %v1266
    %v1269 = vmul.f32 %v1231, %v1267
    %v1271 = vlaneseq
    %v1272 = vshrl.u32 %v1271, 7
    %v1273 = vsub.s32 0, %v1272
    %v1274 = vrot.slane %v1269, %v1273
    %v1275 = vlaneseq
    %v1276 = vshrl.u32 %v1275, 7
    %v1277 = vsub.s32 1, %v1276
    %v1278 = vrot.slane %v1269, %v1277
    %v1279 = vlaneseq
    %v1280 = vshrl.u32 %v1279, 7
    %v1281 = vsub.s32 2, %v1280
    %v1282 = vrot.slane %v1269, %v1281
    %v1283 = vlaneseq
    %v1284 = vshrl.u32 %v1283, 7
    %v1285 = vsub.s32 3, %v1284
    %v1286 = vrot.slane %v1269, %v1285
    %v1291 = vmul.f32 %v1191, %v1274
    %v1292 = vmul.f32 %v1192, %v1278
    %v1293 = vmul.f32 %v1193, %v1282
    %v1294 = vmul.f32 %v1194, %v1286
    %s1295 = scalar_lea.vmem %s4, 1
    %v1296 = vld [vmem:[%s1295] ss:$2 sm:$0xf]
    %v1298 = vlaneseq
    %v1299 = vshrl.u32 %v1298, 7
    %v1300 = vsub.s32 0, %v1299
    %v1301 = vrot.slane %v1296, %v1300
    %v1302 = vlaneseq
    %v1303 = vshrl.u32 %v1302, 7
    %v1304 = vsub.s32 1, %v1303
    %v1305 = vrot.slane %v1296, %v1304
    %v1306 = vlaneseq
    %v1307 = vshrl.u32 %v1306, 7
    %v1308 = vsub.s32 2, %v1307
    %v1309 = vrot.slane %v1296, %v1308
    %v1310 = vlaneseq
    %v1311 = vshrl.u32 %v1310, 7
    %v1312 = vsub.s32 3, %v1311
    %v1313 = vrot.slane %v1296, %v1312
    %v1318 = vadd.f32 %v1291, %v1301
    %v1319 = vadd.f32 %v1292, %v1305
    %v1320 = vadd.f32 %v1293, %v1309
    %v1321 = vadd.f32 %v1294, %v1313
    %v1322 = vmax.f32 %v1318, 0.0
    %v1323 = vmax.f32 %v1319, 0.0
    %v1324 = vmax.f32 %v1320, 0.0
    %v1325 = vmax.f32 %v1321, 0.0
    %v1326 = vld [vmem:[#allocation8] sm:$0xf]
    %v1327 = vld [vmem:[#allocation8 + $0x4] sm:$0xf]
    %v1328 = vld [vmem:[#allocation8 + $0x8] sm:$0xf]
    %v1329 = vld [vmem:[#allocation8 + $0xc] sm:$0xf]
    %v1330 = vld [vmem:[#allocation8 + $0x10] sm:$0xf]
    %v1331 = vld [vmem:[#allocation8 + $0x14] sm:$0xf]
    %v1332 = vld [vmem:[#allocation8 + $0x18] sm:$0xf]
    %v1333 = vld [vmem:[#allocation8 + $0x1c] sm:$0xf]
    %v1334 = vld [vmem:[#allocation8 + $0x20] sm:$0xf]
    %v1335 = vld [vmem:[#allocation8 + $0x24] sm:$0xf]
    %v1336 = vld [vmem:[#allocation8 + $0x28] sm:$0xf]
    %v1337 = vld [vmem:[#allocation8 + $0x2c] sm:$0xf]
    %v1338 = vld [vmem:[#allocation8 + $0x30] sm:$0xf]
    %v1339 = vld [vmem:[#allocation8 + $0x34] sm:$0xf]
    %v1340 = vld [vmem:[#allocation8 + $0x38] sm:$0xf]
    %v1341 = vld [vmem:[#allocation8 + $0x3c] sm:$0xf]
    %v1342 = vld [vmem:[#allocation8 + $0x40] sm:$0xf]
    %v1343 = vld [vmem:[#allocation8 + $0x44] sm:$0xf]
    %v1344 = vld [vmem:[#allocation8 + $0x48] sm:$0xf]
    %v1345 = vld [vmem:[#allocation8 + $0x4c] sm:$0xf]
    %v1346 = vld [vmem:[#allocation8 + $0x50] sm:$0xf]
    %v1347 = vld [vmem:[#allocation8 + $0x54] sm:$0xf]
    %v1348 = vld [vmem:[#allocation8 + $0x58] sm:$0xf]
    %v1349 = vld [vmem:[#allocation8 + $0x5c] sm:$0xf]
    %v1350 = vld [vmem:[#allocation8 + $0x60] sm:$0xf]
    %v1351 = vld [vmem:[#allocation8 + $0x64] sm:$0xf]
    %v1352 = vld [vmem:[#allocation8 + $0x68] sm:$0xf]
    %v1353 = vld [vmem:[#allocation8 + $0x6c] sm:$0xf]
    %v1354 = vld [vmem:[#allocation8 + $0x70] sm:$0xf]
    %v1355 = vld [vmem:[#allocation8 + $0x74] sm:$0xf]
    %v1356 = vld [vmem:[#allocation8 + $0x78] sm:$0xf]
    %v1357 = vld [vmem:[#allocation8 + $0x7c] sm:$0xf]
    %v1358 = vld [vmem:[#allocation8 + $0x80] sm:$0xf]
    %v1359 = vld [vmem:[#allocation8 + $0x84] sm:$0xf]
    %v1360 = vld [vmem:[#allocation8 + $0x88] sm:$0xf]
    %v1361 = vld [vmem:[#allocation8 + $0x8c] sm:$0xf]
    %v1362 = vld [vmem:[#allocation8 + $0x90] sm:$0xf]
    %v1363 = vld [vmem:[#allocation8 + $0x94] sm:$0xf]
    %v1364 = vld [vmem:[#allocation8 + $0x98] sm:$0xf]
    %v1365 = vld [vmem:[#allocation8 + $0x9c] sm:$0xf]
    %v1366 = vld [vmem:[#allocation8 + $0xa0] sm:$0xf]
    %v1367 = vld [vmem:[#allocation8 + $0xa4] sm:$0xf]
    %v1368 = vld [vmem:[#allocation8 + $0xa8] sm:$0xf]
    %v1369 = vld [vmem:[#allocation8 + $0xac] sm:$0xf]
    %v1370 = vld [vmem:[#allocation8 + $0xb0] sm:$0xf]
    %v1371 = vld [vmem:[#allocation8 + $0xb4] sm:$0xf]
    %v1372 = vld [vmem:[#allocation8 + $0xb8] sm:$0xf]
    %v1373 = vld [vmem:[#allocation8 + $0xbc] sm:$0xf]
    %v1374 = vld [vmem:[#allocation8 + $0xc0] sm:$0xf]
    %v1375 = vld [vmem:[#allocation8 + $0xc4] sm:$0xf]
    %v1376 = vld [vmem:[#allocation8 + $0xc8] sm:$0xf]
    %v1377 = vld [vmem:[#allocation8 + $0xcc] sm:$0xf]
    %v1378 = vld [vmem:[#allocation8 + $0xd0] sm:$0xf]
    %v1379 = vld [vmem:[#allocation8 + $0xd4] sm:$0xf]
    %v1380 = vld [vmem:[#allocation8 + $0xd8] sm:$0xf]
    %v1381 = vld [vmem:[#allocation8 + $0xdc] sm:$0xf]
    %v1382 = vld [vmem:[#allocation8 + $0xe0] sm:$0xf]
    %v1383 = vld [vmem:[#allocation8 + $0xe4] sm:$0xf]
    %v1384 = vld [vmem:[#allocation8 + $0xe8] sm:$0xf]
    %v1385 = vld [vmem:[#allocation8 + $0xec] sm:$0xf]
    %v1386 = vld [vmem:[#allocation8 + $0xf0] sm:$0xf]
    %v1387 = vld [vmem:[#allocation8 + $0xf4] sm:$0xf]
    %v1388 = vld [vmem:[#allocation8 + $0xf8] sm:$0xf]
    %v1389 = vld [vmem:[#allocation8 + $0xfc] sm:$0xf]
    %v1390 = vunpack.c.l.bf16 %v1326
    %v1391 = vunpack.c.l.bf16 %v1327
    %v1392 = vunpack.c.l.bf16 %v1328
    %v1393 = vunpack.c.l.bf16 %v1329
    %v1394 = vunpack.c.l.bf16 %v1330
    %v1395 = vunpack.c.l.bf16 %v1331
    %v1396 = vunpack.c.l.bf16 %v1332
    %v1397 = vunpack.c.l.bf16 %v1333
    %v1398 = vunpack.c.l.bf16 %v1334
    %v1399 = vunpack.c.l.bf16 %v1335
    %v1400 = vunpack.c.l.bf16 %v1336
    %v1401 = vunpack.c.l.bf16 %v1337
    %v1402 = vunpack.c.l.bf16 %v1338
    %v1403 = vunpack.c.l.bf16 %v1339
    %v1404 = vunpack.c.l.bf16 %v1340
    %v1405 = vunpack.c.l.bf16 %v1341
    %v1406 = vunpack.c.l.bf16 %v1342
    %v1407 = vunpack.c.l.bf16 %v1343
    %v1408 = vunpack.c.l.bf16 %v1344
    %v1409 = vunpack.c.l.bf16 %v1345
    %v1410 = vunpack.c.l.bf16 %v1346
    %v1411 = vunpack.c.l.bf16 %v1347
    %v1412 = vunpack.c.l.bf16 %v1348
    %v1413 = vunpack.c.l.bf16 %v1349
    %v1414 = vunpack.c.l.bf16 %v1350
    %v1415 = vunpack.c.l.bf16 %v1351
    %v1416 = vunpack.c.l.bf16 %v1352
    %v1417 = vunpack.c.l.bf16 %v1353
    %v1418 = vunpack.c.l.bf16 %v1354
    %v1419 = vunpack.c.l.bf16 %v1355
    %v1420 = vunpack.c.l.bf16 %v1356
    %v1421 = vunpack.c.l.bf16 %v1357
    %v1422 = vunpack.c.l.bf16 %v1358
    %v1423 = vunpack.c.l.bf16 %v1359
    %v1424 = vunpack.c.l.bf16 %v1360
    %v1425 = vunpack.c.l.bf16 %v1361
    %v1426 = vunpack.c.l.bf16 %v1362
    %v1427 = vunpack.c.l.bf16 %v1363
    %v1428 = vunpack.c.l.bf16 %v1364
    %v1429 = vunpack.c.l.bf16 %v1365
    %v1430 = vunpack.c.l.bf16 %v1366
    %v1431 = vunpack.c.l.bf16 %v1367
    %v1432 = vunpack.c.l.bf16 %v1368
    %v1433 = vunpack.c.l.bf16 %v1369
    %v1434 = vunpack.c.l.bf16 %v1370
    %v1435 = vunpack.c.l.bf16 %v1371
    %v1436 = vunpack.c.l.bf16 %v1372
    %v1437 = vunpack.c.l.bf16 %v1373
    %v1438 = vunpack.c.l.bf16 %v1374
    %v1439 = vunpack.c.l.bf16 %v1375
    %v1440 = vunpack.c.l.bf16 %v1376
    %v1441 = vunpack.c.l.bf16 %v1377
    %v1442 = vunpack.c.l.bf16 %v1378
    %v1443 = vunpack.c.l.bf16 %v1379
    %v1444 = vunpack.c.l.bf16 %v1380
    %v1445 = vunpack.c.l.bf16 %v1381
    %v1446 = vunpack.c.l.bf16 %v1382
    %v1447 = vunpack.c.l.bf16 %v1383
    %v1448 = vunpack.c.l.bf16 %v1384
    %v1449 = vunpack.c.l.bf16 %v1385
    %v1450 = vunpack.c.l.bf16 %v1386
    %v1451 = vunpack.c.l.bf16 %v1387
    %v1452 = vunpack.c.l.bf16 %v1388
    %v1453 = vunpack.c.l.bf16 %v1389
    %v1454 = vld [vmem:[%s6] sm:$0x1]
    %v1456 = vlaneseq
    %v1457 = vshrl.u32 %v1456, 7
    %v1458 = vsub.s32 0, %v1457
    %v1459 = vrot.slane %v1454, %v1458
    %1461 = vmatprep.subr.mxu0 0.0
    %1462 = vmatpush1.msra.mxu0 %v1390
    %1463 = vmatprep.subr.mxu0 0.0
    %1464 = vmatpush1.msra.mxu0 %v1391
    %1465 = vmatprep.subr.mxu0 0.0
    %1466 = vmatpush1.msra.mxu0 %v1392
    %1467 = vmatprep.subr.mxu0 0.0
    %1468 = vmatpush1.msra.mxu0 %v1393
    %1469 = vmatprep.subr.mxu0 0.0
    %1470 = vmatpush1.msra.mxu0 %v1394
    %1471 = vmatprep.subr.mxu0 0.0
    %1472 = vmatpush1.msra.mxu0 %v1395
    %1473 = vmatprep.subr.mxu0 0.0
    %1474 = vmatpush1.msra.mxu0 %v1396
    %1475 = vmatprep.subr.mxu0 0.0
    %1476 = vmatpush1.msra.mxu0 %v1397
    %1477 = vmatprep.subr.mxu0 0.0
    %1478 = vmatpush1.msra.mxu0 %v1398
    %1479 = vmatprep.subr.mxu0 0.0
    %1480 = vmatpush1.msra.mxu0 %v1399
    %1481 = vmatprep.subr.mxu0 0.0
    %1482 = vmatpush1.msra.mxu0 %v1400
    %1483 = vmatprep.subr.mxu0 0.0
    %1484 = vmatpush1.msra.mxu0 %v1401
    %1485 = vmatprep.subr.mxu0 0.0
    %1486 = vmatpush1.msra.mxu0 %v1402
    %1487 = vmatprep.subr.mxu0 0.0
    %1488 = vmatpush1.msra.mxu0 %v1403
    %1489 = vmatprep.subr.mxu0 0.0
    %1490 = vmatpush1.msra.mxu0 %v1404
    %1491 = vmatprep.subr.mxu0 0.0
    %1492 = vmatpush1.msra.mxu0 %v1405
    %1493 = vmatprep.subr.mxu0 0.0
    %1494 = vmatpush1.msra.mxu0 %v1406
    %1495 = vmatprep.subr.mxu0 0.0
    %1496 = vmatpush1.msra.mxu0 %v1407
    %1497 = vmatprep.subr.mxu0 0.0
    %1498 = vmatpush1.msra.mxu0 %v1408
    %1499 = vmatprep.subr.mxu0 0.0
    %1500 = vmatpush1.msra.mxu0 %v1409
    %1501 = vmatprep.subr.mxu0 0.0
    %1502 = vmatpush1.msra.mxu0 %v1410
    %1503 = vmatprep.subr.mxu0 0.0
    %1504 = vmatpush1.msra.mxu0 %v1411
    %1505 = vmatprep.subr.mxu0 0.0
    %1506 = vmatpush1.msra.mxu0 %v1412
    %1507 = vmatprep.subr.mxu0 0.0
    %1508 = vmatpush1.msra.mxu0 %v1413
    %1509 = vmatprep.subr.mxu0 0.0
    %1510 = vmatpush1.msra.mxu0 %v1414
    %1511 = vmatprep.subr.mxu0 0.0
    %1512 = vmatpush1.msra.mxu0 %v1415
    %1513 = vmatprep.subr.mxu0 0.0
    %1514 = vmatpush1.msra.mxu0 %v1416
    %1515 = vmatprep.subr.mxu0 0.0
    %1516 = vmatpush1.msra.mxu0 %v1417
    %1517 = vmatprep.subr.mxu0 0.0
    %1518 = vmatpush1.msra.mxu0 %v1418
    %1519 = vmatprep.subr.mxu0 0.0
    %1520 = vmatpush1.msra.mxu0 %v1419
    %1521 = vmatprep.subr.mxu0 0.0
    %1522 = vmatpush1.msra.mxu0 %v1420
    %1523 = vmatprep.subr.mxu0 0.0
    %1524 = vmatpush1.msra.mxu0 %v1421
    %1525 = vmatprep.mubr.f32.mxu0 %v1323
    %1526 = vmatmul.mubr.f32.gmra.mrb[0].mxu0 %v1322
    %v1527 = vpop.f32.mrb[0].mxu0
    %v1528 = vadd.f32 %v1459, %v1527
    %v1529 = vpop.f32.mrb[0].mxu0
    %1530 = vdwg.mxu0
    %1531 = vmatprep.subr.mxu0 0.0
    %1532 = vmatpush1.msra.mxu0 %v1422
    %1533 = vmatprep.subr.mxu0 0.0
    %1534 = vmatpush1.msra.mxu0 %v1423
    %1535 = vmatprep.subr.mxu0 0.0
    %1536 = vmatpush1.msra.mxu0 %v1424
    %1537 = vmatprep.subr.mxu0 0.0
    %1538 = vmatpush1.msra.mxu0 %v1425
    %1539 = vmatprep.subr.mxu0 0.0
    %1540 = vmatpush1.msra.mxu0 %v1426
    %1541 = vmatprep.subr.mxu0 0.0
    %1542 = vmatpush1.msra.mxu0 %v1427
    %1543 = vmatprep.subr.mxu0 0.0
    %1544 = vmatpush1.msra.mxu0 %v1428
    %1545 = vmatprep.subr.mxu0 0.0
    %1546 = vmatpush1.msra.mxu0 %v1429
    %1547 = vmatprep.subr.mxu0 0.0
    %1548 = vmatpush1.msra.mxu0 %v1430
    %1549 = vmatprep.subr.mxu0 0.0
    %1550 = vmatpush1.msra.mxu0 %v1431
    %1551 = vmatprep.subr.mxu0 0.0
    %1552 = vmatpush1.msra.mxu0 %v1432
    %1553 = vmatprep.subr.mxu0 0.0
    %1554 = vmatpush1.msra.mxu0 %v1433
    %1555 = vmatprep.subr.mxu0 0.0
    %1556 = vmatpush1.msra.mxu0 %v1434
    %1557 = vmatprep.subr.mxu0 0.0
    %1558 = vmatpush1.msra.mxu0 %v1435
    %1559 = vmatprep.subr.mxu0 0.0
    %1560 = vmatpush1.msra.mxu0 %v1436
    %1561 = vmatprep.subr.mxu0 0.0
    %1562 = vmatpush1.msra.mxu0 %v1437
    %1563 = vmatprep.subr.mxu0 0.0
    %1564 = vmatpush1.msra.mxu0 %v1438
    %1565 = vmatprep.subr.mxu0 0.0
    %1566 = vmatpush1.msra.mxu0 %v1439
    %1567 = vmatprep.subr.mxu0 0.0
    %1568 = vmatpush1.msra.mxu0 %v1440
    %1569 = vmatprep.subr.mxu0 0.0
    %1570 = vmatpush1.msra.mxu0 %v1441
    %1571 = vmatprep.subr.mxu0 0.0
    %1572 = vmatpush1.msra.mxu0 %v1442
    %1573 = vmatprep.subr.mxu0 0.0
    %1574 = vmatpush1.msra.mxu0 %v1443
    %1575 = vmatprep.subr.mxu0 0.0
    %1576 = vmatpush1.msra.mxu0 %v1444
    %1577 = vmatprep.subr.mxu0 0.0
    %1578 = vmatpush1.msra.mxu0 %v1445
    %1579 = vmatprep.subr.mxu0 0.0
    %1580 = vmatpush1.msra.mxu0 %v1446
    %1581 = vmatprep.subr.mxu0 0.0
    %1582 = vmatpush1.msra.mxu0 %v1447
    %1583 = vmatprep.subr.mxu0 0.0
    %1584 = vmatpush1.msra.mxu0 %v1448
    %1585 = vmatprep.subr.mxu0 0.0
    %1586 = vmatpush1.msra.mxu0 %v1449
    %1587 = vmatprep.subr.mxu0 0.0
    %1588 = vmatpush1.msra.mxu0 %v1450
    %1589 = vmatprep.subr.mxu0 0.0
    %1590 = vmatpush1.msra.mxu0 %v1451
    %1591 = vmatprep.subr.mxu0 0.0
    %1592 = vmatpush1.msra.mxu0 %v1452
    %1593 = vmatprep.subr.mxu0 0.0
    %1594 = vmatpush1.msra.mxu0 %v1453
    %1595 = vmatprep.mubr.f32.mxu0 %v1325
    %1596 = vmatmul.mubr.f32.gmra.mrb[0].mxu0 %v1324
    %v1597 = vpop.f32.mrb[0].mxu0
    %v1598 = vadd.f32 %v1528, %v1597
    %v1599 = vpop.f32.mrb[0].mxu0
    %1600 = vdwg.mxu0
    %1601 = vst [vmem:[#allocation10] sm:$0x3] %v1598
    // Predicated region
    $region46: #{tpu_custom_call.1} parent=1 // pred_check
      _
    $region47: #{tpu_custom_call.1} parent=1 // pred_check_branch
      %1603 = sbr.rel (0) target = $region49
    $region48: #{tpu_custom_call.1} parent=1 // pred_region
      %s1605 = ssub.s32 32, 32
      %1606 = vsyncadd [#allocation4], %s1605
      %s1608 = sshll.u32 [#allocation10], 4
      %s1609 = int_to_ptr.vmem [resolvable:$true] %s1608
      %1611 = dma.vmem_to_hbm [thread:$0]  %s1609, 32, %s7, [#allocation4]
    $region49: #{tpu_custom_call.1} parent=1 // pred_fallthru
      _
    // Predicated region
    $region50: #{tpu_custom_call.1} parent=1 // pred_check
      _
    $region51: #{tpu_custom_call.1} parent=1 // pred_check_branch
      %1613 = sbr.rel (0) target = $region53
    $region52: #{tpu_custom_call.1} parent=1 // pred_region
      %s1615 = ssub.s32 64, 64
      %1616 = vsyncadd [#allocation12], %s1615
      %s1618 = sshll.u32 [#allocation11], 4
      %s1619 = int_to_ptr.vmem [resolvable:$true] %s1618
      %1621 = dma.vmem_to_hbm [thread:$0]  %s1619, 64, %s8, [#allocation12]
    $region53: #{tpu_custom_call.1} parent=1 // pred_fallthru
      _
    // Predicated region
    $region54: #{tpu_custom_call.1} parent=1 // pred_check
      _
    $region55: #{tpu_custom_call.1} parent=1 // pred_check_branch
      %1623 = sbr.rel (0) target = $region57
    $region56: #{tpu_custom_call.1} parent=1 // pred_region
      %1624 = dma.done [#allocation4], 32
    $region57: #{tpu_custom_call.1} parent=1 // pred_fallthru
      _
    // Predicated region
    $region58: #{tpu_custom_call.1} parent=1 // pred_check
      _
    $region59: #{tpu_custom_call.1} parent=1 // pred_check_branch
      %1626 = sbr.rel (0) target = $region61
    $region60: #{tpu_custom_call.1} parent=1 // pred_region
      %1627 = dma.done [#allocation12], 64
    $region61: #{tpu_custom_call.1} parent=1 // pred_fallthru
      _
    %1628 = vsyncpa [#allocation3], 1
    %1629 = vsyncpa [#allocation6], 1
    %1630 = vsyncpa [#allocation9], 1
    %1631 = vsyncpa [#allocation4], 1
    %1632 = vsyncpa [#allocation12], 1

</llo_original>
